<compile_context>
chip_gen: v5e
topology: v5e:2x2
jax: 0.10.0
libtpu: 0.0.40
codegen_flags: <defaults>
</compile_context>

<pallas_src>
import functools

import jax
import jax.numpy as jnp
from jax.experimental import pallas as pl
from jax.experimental.pallas import tpu as pltpu

LOG_STD_MIN = -5.0
LOG_STD_MAX = 2.0
LOG_2PI = 1.8378770664093453
GAMMA = 0.99
TAU = 0.005

_VMEM = pltpu.MemorySpace.VMEM
_SMEM = pltpu.MemorySpace.SMEM


def _mm(x, w):
    # bf16 inputs -> MXU-native on v5e/v6e/v7x, f32 accumulation.
    return jnp.dot(x.astype(jnp.bfloat16), w.astype(jnp.bfloat16),
                   preferred_element_type=jnp.float32)


# ----------------------------------------------------------------------------
# Fused SAC forward kernel
# ----------------------------------------------------------------------------
def sac_fused_kernel(
        # data
        obs_ref, act_ref, rew_ref, term_ref, next_obs_ref, noise_ref,
        log_alpha_ref,
        # actor params
        aw1_ref, ab1_ref, aw2_ref, ab2_ref, awm_ref, abm_ref, awls_ref, abls_ref,
        # online twin critics (stacked along output dim)
        ow1o_ref, ow1a_ref, ob1_ref, ow2_ref, ob2_ref, ow3_ref, ob3_ref,
        # target twin critics (stacked along output dim)
        tw1o_ref, tw1a_ref, tb1_ref, tw2_ref, tb2_ref, tw3_ref, tb3_ref,
        # outputs
        loss_ref,
        ntw1o_ref, ntw1a_ref, ntb1_ref, ntw2_ref, ntb2_ref, ntw3_ref, ntb3_ref,
        *, gamma, tau, target_entropy, batch, act_size):
    B = batch
    inv_b = 1.0 / float(B)

    obs = obs_ref[...]
    act = act_ref[...]
    next_obs = next_obs_ref[...]

    # ---------------- actor trunk on stacked [next_obs ; obs] ---------------
    x_a = jnp.concatenate([next_obs, obs], axis=0)                    # (2B, OBS)
    h = jnp.maximum(_mm(x_a, aw1_ref[...]) + ab1_ref[...], 0.0)
    h = jnp.maximum(_mm(h, aw2_ref[...]) + ab2_ref[...], 0.0)
    mean = _mm(h, awm_ref[...]) + abm_ref[...]                        # (2B, ACT)
    log_std = jnp.tanh(_mm(h, awls_ref[...]) + abls_ref[...])
    log_std = LOG_STD_MIN + 0.5 * (LOG_STD_MAX - LOG_STD_MIN) * (log_std + 1.0)
    std = jnp.exp(log_std)

    def squash(mean_r, std_r, log_std_r, eps):
        x_t = mean_r + std_r * eps
        y_t = jnp.tanh(x_t)                        # action_scale=1, action_bias=0
        lp = -0.5 * (eps * eps) - log_std_r - jnp.log(1.0 - y_t * y_t + 1e-6)
        # constant -0.5*log(2*pi) per action dim folded into the summed log-prob
        logp = jnp.sum(lp, axis=1, keepdims=True) - 0.5 * float(act_size) * LOG_2PI
        return y_t, logp

    mean_n, mean_o = mean[:B], mean[B:]
    std_n, std_o = std[:B], std[B:]
    ls_n, ls_o = log_std[:B], log_std[B:]
    eps_n = noise_ref[:B, :]
    eps_pi = noise_ref[B:2 * B, :]
    eps_al = noise_ref[2 * B:, :]

    next_act, next_logp = squash(mean_n, std_n, ls_n, eps_n)   # critic-target path
    pi, logp_pi = squash(mean_o, std_o, ls_o, eps_pi)          # actor-loss path
    _, logp_al = squash(mean_o, std_o, ls_o, eps_al)           # alpha-loss path

    # ---------------- target twin critics on [next_obs || next_act] ---------
    ht = jnp.maximum(_mm(next_obs, tw1o_ref[...]) + _mm(next_act, tw1a_ref[...])
                     + tb1_ref[...], 0.0)                             # (B, 2H)
    ht = jnp.maximum(_mm(ht, tw2_ref[...]) + tb2_ref[...], 0.0)
    q_t = _mm(ht, tw3_ref[...]) + tb3_ref[...]                        # (B, 2)

    # ---------------- online twin critics on stacked [(obs,act);(obs,pi)] ---
    x_obs = jnp.concatenate([obs, obs], axis=0)                       # (2B, OBS)
    x_act = jnp.concatenate([act, pi], axis=0)                        # (2B, ACT)
    ho = jnp.maximum(_mm(x_obs, ow1o_ref[...]) + _mm(x_act, ow1a_ref[...])
                     + ob1_ref[...], 0.0)                             # (2B, 2H)
    ho = jnp.maximum(_mm(ho, ow2_ref[...]) + ob2_ref[...], 0.0)
    q_on = _mm(ho, ow3_ref[...]) + ob3_ref[...]                       # (2B, 2)

    # ---------------- losses -------------------------------------------------
    alpha = jnp.exp(jnp.full((1, 1), log_alpha_ref[0], dtype=jnp.float32))

    min_q_next = jnp.min(q_t, axis=1, keepdims=True) - alpha * next_logp
    next_q = rew_ref[...] + (1.0 - term_ref[...]) * gamma * min_q_next  # (B, 1)

    d = q_on[:B, :] - next_q                                          # (B, 2)
    critic_loss = jnp.sum(d * d, keepdims=True) * inv_b               # qf1+qf2 mse

    min_q_pi = jnp.min(q_on[B:, :], axis=1, keepdims=True)            # (B, 1)
    actor_loss = jnp.sum(alpha * logp_pi - min_q_pi, keepdims=True) * inv_b
    alpha_loss = jnp.sum(-alpha * (logp_al + target_entropy), keepdims=True) * inv_b
    target_q = jnp.sum(next_q, keepdims=True) * inv_b
    log_pi_mean = jnp.sum(logp_al, keepdims=True) * inv_b

    # pack the 5 scalars into one lane-dense (1, 128) row
    lane = jax.lax.broadcasted_iota(jnp.int32, (1, 128), 1)
    row = jnp.where(lane == 0, critic_loss, 0.0)
    row = jnp.where(lane == 1, actor_loss, row)
    row = jnp.where(lane == 2, alpha_loss, row)
    row = jnp.where(lane == 3, target_q, row)
    row = jnp.where(lane == 4, log_pi_mean, row)
    loss_ref[...] = row

    # ---------------- Polyak soft target update (aliased -> in place) -------
    t = tau
    r = 1.0 - tau
    ntw1o_ref[...] = t * ow1o_ref[...] + r * tw1o_ref[...]
    ntw1a_ref[...] = t * ow1a_ref[...] + r * tw1a_ref[...]
    ntb1_ref[...] = t * ob1_ref[...] + r * tb1_ref[...]
    ntw2_ref[...] = t * ow2_ref[...] + r * tw2_ref[...]
    ntb2_ref[...] = t * ob2_ref[...] + r * tb2_ref[...]
    ntw3_ref[...] = t * ow3_ref[...] + r * tw3_ref[...]
    ntb3_ref[...] = t * ob3_ref[...] + r * tb3_ref[...]


def _spec(ms=_VMEM):
    return pl.BlockSpec(memory_space=ms)


_TGT_KEYS = ("w1_obs", "w1_act", "b1", "w2", "b2", "w3", "b3")


# ----------------------------------------------------------------------------
# Full SAC.forward equivalent (loss/logging path; see TODO(synk) at top).
# ----------------------------------------------------------------------------
@functools.partial(jax.jit, static_argnames=("gamma", "tau", "target_entropy"))
def sac_forward(params, obs, act, rew, term, next_obs, key,
                *, gamma, tau, target_entropy):
    B = obs.shape[0]
    act_size = params["actor"]["wm"].shape[1]
    noise = jax.random.normal(key, (3 * B, act_size), jnp.float32)

    a = params["actor"]
    qo = params["q_online"]
    qt = params["q_target"]

    args = (
        obs, act,
        rew.reshape(B, 1).astype(jnp.float32),
        term.reshape(B, 1).astype(jnp.float32),
        next_obs, noise,
        params["log_alpha"],
        a["w1"], a["b1"], a["w2"], a["b2"], a["wm"], a["bm"], a["wls"], a["bls"],
        qo["w1_obs"], qo["w1_act"], qo["b1"], qo["w2"], qo["b2"], qo["w3"], qo["b3"],
        qt["w1_obs"], qt["w1_act"], qt["b1"], qt["w2"], qt["b2"], qt["w3"], qt["b3"],
    )

    in_specs = [_spec() for _ in args]
    in_specs[6] = _spec(_SMEM)          # log_alpha scalar lives in SMEM

    tgt_shapes = tuple(jax.ShapeDtypeStruct(qt[k].shape, jnp.float32)
                       for k in _TGT_KEYS)
    out_shape = (jax.ShapeDtypeStruct((1, 128), jnp.float32),) + tgt_shapes

    kern = functools.partial(
        sac_fused_kernel, gamma=gamma, tau=tau,
        target_entropy=target_entropy, batch=B, act_size=act_size)

    outs = pl.pallas_call(
        kern,
        out_shape=out_shape,
        in_specs=in_specs,
        out_specs=tuple(_spec() for _ in out_shape),
        # target-critic params (inputs 22..28) update in place (Polyak)
        input_output_aliases={22: 1, 23: 2, 24: 3, 25: 4, 26: 5, 27: 6, 28: 7},
    )(*args)

    row = outs[0]
    new_q_target = dict(zip(_TGT_KEYS, outs[1:]))
    logs = {
        "algorithm/critic_loss": row[0, 0],
        "algorithm/actor_loss": row[0, 1],
        "algorithm/alpha_loss": row[0, 2],
        "algorithm/target_q": row[0, 3],
        "algorithm/log_pi": row[0, 4],
    }
    return logs, new_q_target


# ----------------------------------------------------------------------------
# Parameter init (PyTorch nn.Linear default: U(+-1/sqrt(fan_in)))
# ----------------------------------------------------------------------------
def _linear_init(key, fan_in, fan_out):
    kw, kb = jax.random.split(key)
    bound = 1.0 / (float(fan_in) ** 0.5)
    w = jax.random.uniform(kw, (fan_in, fan_out), jnp.float32, -bound, bound)
    b = jax.random.uniform(kb, (1, fan_out), jnp.float32, -bound, bound)
    return w, b


def init_actor(key, obs_size, act_size, hidden):
    k1, k2, k3, k4 = jax.random.split(key, 4)
    w1, b1 = _linear_init(k1, obs_size, hidden)
    w2, b2 = _linear_init(k2, hidden, hidden)
    wm, bm = _linear_init(k3, hidden, act_size)
    wls, bls = _linear_init(k4, hidden, act_size)
    return {"w1": w1, "b1": b1, "w2": w2, "b2": b2,
            "wm": wm, "bm": bm, "wls": wls, "bls": bls}


def _init_single_qnet(key, obs_size, act_size, hidden):
    k1, k2, k3 = jax.random.split(key, 3)
    w1, b1 = _linear_init(k1, obs_size + act_size, hidden)
    w2, b2 = _linear_init(k2, hidden, hidden)
    w3, b3 = _linear_init(k3, hidden, 1)
    return {"w1": w1, "b1": b1, "w2": w2, "b2": b2, "w3": w3, "b3": b3}


def init_stacked_critics(key, obs_size, act_size, hidden):
    """Twin QNetworks (qf1, qf2) stacked along the output/feature dimension."""
    k1, k2 = jax.random.split(key)
    q1 = _init_single_qnet(k1, obs_size, act_size, hidden)
    q2 = _init_single_qnet(k2, obs_size, act_size, hidden)
    H = hidden
    w1 = jnp.concatenate([q1["w1"], q2["w1"]], axis=1)            # (OBS+ACT, 2H)
    b1 = jnp.concatenate([q1["b1"], q2["b1"]], axis=1)            # (1, 2H)
    w2 = jnp.zeros((2 * H, 2 * H), jnp.float32)                   # block-diagonal
    w2 = w2.at[:H, :H].set(q1["w2"]).at[H:, H:].set(q2["w2"])
    b2 = jnp.concatenate([q1["b2"], q2["b2"]], axis=1)            # (1, 2H)
    w3 = jnp.zeros((2 * H, 2), jnp.float32)                       # stacked heads
    w3 = w3.at[:H, 0:1].set(q1["w3"]).at[H:, 1:2].set(q2["w3"])
    b3 = jnp.concatenate([q1["b3"], q2["b3"]], axis=1)            # (1, 2)
    return {"w1_obs": w1[:obs_size], "w1_act": w1[obs_size:],
            "b1": b1, "w2": w2, "b2": b2, "w3": w3, "b3": b3}


if __name__ == "__main__":
    B, OBS, ACT, HID = 8, 16, 8, 32

    root = jax.random.PRNGKey(0)
    k_actor, k_q, k_data, k_noise = jax.random.split(root, 4)

    q_online = init_stacked_critics(k_q, OBS, ACT, HID)
    params = {
        "actor": init_actor(k_actor, OBS, ACT, HID),
        "q_online": q_online,
        # targets initialized from the online nets (load_state_dict)
        "q_target": jax.tree_util.tree_map(lambda x: x, q_online),
        "log_alpha": jnp.zeros((1,), jnp.float32),
    }

    kd1, kd2, kd3, kd4, kd5 = jax.random.split(k_data, 5)
    obs = jax.random.normal(kd1, (B, OBS), jnp.float32)
    act = jnp.tanh(jax.random.normal(kd2, (B, ACT), jnp.float32))
    rew = jax.random.normal(kd3, (B, 1), jnp.float32)
    term = (jax.random.uniform(kd4, (B, 1)) < 0.1).astype(jnp.float32)
    next_obs = jax.random.normal(kd5, (B, OBS), jnp.float32)

    logs, new_q_target = sac_forward(
        params, obs, act, rew, term, next_obs, k_noise,
        gamma=GAMMA, tau=TAU, target_entropy=float(-ACT))

    jax.block_until_ready(logs)
    jax.block_until_ready(new_q_target)
    print("KERNEL_OK")
</pallas_src>

<mosaic_0001>
module attributes {stable_mosaic.version = 11 : i64} {
  func.func @sac_fused_kernel(%arg0: memref<8x16xf32, #tpu.memory_space<vmem>>, %arg1: memref<8x8xf32, #tpu.memory_space<vmem>>, %arg2: memref<8x1xf32, #tpu.memory_space<vmem>>, %arg3: memref<8x1xf32, #tpu.memory_space<vmem>>, %arg4: memref<8x16xf32, #tpu.memory_space<vmem>>, %arg5: memref<24x8xf32, #tpu.memory_space<vmem>>, %arg6: memref<1xf32, #tpu.memory_space<smem>>, %arg7: memref<16x32xf32, #tpu.memory_space<vmem>>, %arg8: memref<1x32xf32, #tpu.memory_space<vmem>>, %arg9: memref<32x32xf32, #tpu.memory_space<vmem>>, %arg10: memref<1x32xf32, #tpu.memory_space<vmem>>, %arg11: memref<32x8xf32, #tpu.memory_space<vmem>>, %arg12: memref<1x8xf32, #tpu.memory_space<vmem>>, %arg13: memref<32x8xf32, #tpu.memory_space<vmem>>, %arg14: memref<1x8xf32, #tpu.memory_space<vmem>>, %arg15: memref<16x64xf32, #tpu.memory_space<vmem>>, %arg16: memref<8x64xf32, #tpu.memory_space<vmem>>, %arg17: memref<1x64xf32, #tpu.memory_space<vmem>>, %arg18: memref<64x64xf32, #tpu.memory_space<vmem>>, %arg19: memref<1x64xf32, #tpu.memory_space<vmem>>, %arg20: memref<64x2xf32, #tpu.memory_space<vmem>>, %arg21: memref<1x2xf32, #tpu.memory_space<vmem>>, %arg22: memref<16x64xf32, #tpu.memory_space<vmem>>, %arg23: memref<8x64xf32, #tpu.memory_space<vmem>>, %arg24: memref<1x64xf32, #tpu.memory_space<vmem>>, %arg25: memref<64x64xf32, #tpu.memory_space<vmem>>, %arg26: memref<1x64xf32, #tpu.memory_space<vmem>>, %arg27: memref<64x2xf32, #tpu.memory_space<vmem>>, %arg28: memref<1x2xf32, #tpu.memory_space<vmem>>, %arg29: memref<1x128xf32, #tpu.memory_space<vmem>>, %arg30: memref<16x64xf32, #tpu.memory_space<vmem>>, %arg31: memref<8x64xf32, #tpu.memory_space<vmem>>, %arg32: memref<1x64xf32, #tpu.memory_space<vmem>>, %arg33: memref<64x64xf32, #tpu.memory_space<vmem>>, %arg34: memref<1x64xf32, #tpu.memory_space<vmem>>, %arg35: memref<64x2xf32, #tpu.memory_space<vmem>>, %arg36: memref<1x2xf32, #tpu.memory_space<vmem>>) attributes {dimension_semantics = [], scalar_prefetch = 0 : i64, scratch_operands = 0 : i64, tpu.core_type = #tpu.core_type<tc>} {
    %c0 = arith.constant 0 : index
    %c0_0 = arith.constant 0 : index
    %0 = vector.load %arg0[%c0, %c0_0] : memref<8x16xf32, #tpu.memory_space<vmem>>, vector<8x16xf32>
    %c0_1 = arith.constant 0 : index
    %c0_2 = arith.constant 0 : index
    %1 = vector.load %arg1[%c0_1, %c0_2] : memref<8x8xf32, #tpu.memory_space<vmem>>, vector<8x8xf32>
    %c0_3 = arith.constant 0 : index
    %c0_4 = arith.constant 0 : index
    %2 = vector.load %arg4[%c0_3, %c0_4] : memref<8x16xf32, #tpu.memory_space<vmem>>, vector<8x16xf32>
    %3 = tpu.concatenate %2, %0 in 0 : vector<8x16xf32>, vector<8x16xf32> -> vector<16x16xf32>
    %c0_5 = arith.constant 0 : index
    %c0_6 = arith.constant 0 : index
    %4 = vector.load %arg7[%c0_5, %c0_6] : memref<16x32xf32, #tpu.memory_space<vmem>>, vector<16x32xf32>
    %5 = arith.truncf %3 : vector<16x16xf32> to vector<16x16xbf16>
    %6 = arith.truncf %4 : vector<16x32xf32> to vector<16x32xbf16>
    %cst = arith.constant dense<0.000000e+00> : vector<16x32xf32>
    %7 = tpu.matmul %5, %6, %cst {dimension_numbers = #tpu.dot_dimension_numbers<[1], [0], [0], [1], [0, 0, 1, 1], [], []>} : vector<16x16xbf16>, vector<16x32xbf16>, vector<16x32xf32> -> vector<16x32xf32>
    %c0_7 = arith.constant 0 : index
    %c0_8 = arith.constant 0 : index
    %8 = vector.load %arg8[%c0_7, %c0_8] : memref<1x32xf32, #tpu.memory_space<vmem>>, vector<1x32xf32>
    %9 = vector.broadcast %8 : vector<1x32xf32> to vector<16x32xf32>
    %10 = arith.addf %7, %9 : vector<16x32xf32>
    %cst_9 = arith.constant 0.000000e+00 : f32
    %11 = vector.broadcast %cst_9 : f32 to vector<16x32xf32>
    %12 = arith.maximumf %10, %11 : vector<16x32xf32>
    %c0_10 = arith.constant 0 : index
    %c0_11 = arith.constant 0 : index
    %13 = vector.load %arg9[%c0_10, %c0_11] : memref<32x32xf32, #tpu.memory_space<vmem>>, vector<32x32xf32>
    %14 = arith.truncf %12 : vector<16x32xf32> to vector<16x32xbf16>
    %15 = arith.truncf %13 : vector<32x32xf32> to vector<32x32xbf16>
    %cst_12 = arith.constant dense<0.000000e+00> : vector<16x32xf32>
    %16 = tpu.matmul %14, %15, %cst_12 {dimension_numbers = #tpu.dot_dimension_numbers<[1], [0], [0], [1], [0, 0, 1, 1], [], []>} : vector<16x32xbf16>, vector<32x32xbf16>, vector<16x32xf32> -> vector<16x32xf32>
    %c0_13 = arith.constant 0 : index
    %c0_14 = arith.constant 0 : index
    %17 = vector.load %arg10[%c0_13, %c0_14] : memref<1x32xf32, #tpu.memory_space<vmem>>, vector<1x32xf32>
    %18 = vector.broadcast %17 : vector<1x32xf32> to vector<16x32xf32>
    %19 = arith.addf %16, %18 : vector<16x32xf32>
    %cst_15 = arith.constant 0.000000e+00 : f32
    %20 = vector.broadcast %cst_15 : f32 to vector<16x32xf32>
    %21 = arith.maximumf %19, %20 : vector<16x32xf32>
    %c0_16 = arith.constant 0 : index
    %c0_17 = arith.constant 0 : index
    %22 = vector.load %arg11[%c0_16, %c0_17] : memref<32x8xf32, #tpu.memory_space<vmem>>, vector<32x8xf32>
    %23 = arith.truncf %21 : vector<16x32xf32> to vector<16x32xbf16>
    %24 = arith.truncf %22 : vector<32x8xf32> to vector<32x8xbf16>
    %cst_18 = arith.constant dense<0.000000e+00> : vector<16x8xf32>
    %25 = tpu.matmul %23, %24, %cst_18 {dimension_numbers = #tpu.dot_dimension_numbers<[1], [0], [0], [1], [0, 0, 1, 1], [], []>} : vector<16x32xbf16>, vector<32x8xbf16>, vector<16x8xf32> -> vector<16x8xf32>
    %c0_19 = arith.constant 0 : index
    %c0_20 = arith.constant 0 : index
    %26 = vector.load %arg12[%c0_19, %c0_20] : memref<1x8xf32, #tpu.memory_space<vmem>>, vector<1x8xf32>
    %27 = vector.broadcast %26 : vector<1x8xf32> to vector<16x8xf32>
    %28 = arith.addf %25, %27 : vector<16x8xf32>
    %c0_21 = arith.constant 0 : index
    %c0_22 = arith.constant 0 : index
    %29 = vector.load %arg13[%c0_21, %c0_22] : memref<32x8xf32, #tpu.memory_space<vmem>>, vector<32x8xf32>
    %30 = arith.truncf %21 : vector<16x32xf32> to vector<16x32xbf16>
    %31 = arith.truncf %29 : vector<32x8xf32> to vector<32x8xbf16>
    %cst_23 = arith.constant dense<0.000000e+00> : vector<16x8xf32>
    %32 = tpu.matmul %30, %31, %cst_23 {dimension_numbers = #tpu.dot_dimension_numbers<[1], [0], [0], [1], [0, 0, 1, 1], [], []>} : vector<16x32xbf16>, vector<32x8xbf16>, vector<16x8xf32> -> vector<16x8xf32>
    %c0_24 = arith.constant 0 : index
    %c0_25 = arith.constant 0 : index
    %33 = vector.load %arg14[%c0_24, %c0_25] : memref<1x8xf32, #tpu.memory_space<vmem>>, vector<1x8xf32>
    %34 = vector.broadcast %33 : vector<1x8xf32> to vector<16x8xf32>
    %35 = arith.addf %32, %34 : vector<16x8xf32>
    %36 = math.tanh %35 : vector<16x8xf32>
    %cst_26 = arith.constant 1.000000e+00 : f32
    %37 = vector.broadcast %cst_26 : f32 to vector<16x8xf32>
    %38 = arith.addf %36, %37 : vector<16x8xf32>
    %cst_27 = arith.constant 3.500000e+00 : f32
    %39 = vector.broadcast %cst_27 : f32 to vector<16x8xf32>
    %40 = arith.mulf %39, %38 : vector<16x8xf32>
    %cst_28 = arith.constant -5.000000e+00 : f32
    %41 = vector.broadcast %cst_28 : f32 to vector<16x8xf32>
    %42 = arith.addf %41, %40 : vector<16x8xf32>
    %43 = math.exp %42 : vector<16x8xf32>
    %44 = vector.extract_strided_slice %28 {offsets = [0, 0], sizes = [8, 8], strides = [1, 1]} : vector<16x8xf32> to vector<8x8xf32>
    %45 = vector.extract_strided_slice %28 {offsets = [8, 0], sizes = [8, 8], strides = [1, 1]} : vector<16x8xf32> to vector<8x8xf32>
    %46 = vector.extract_strided_slice %43 {offsets = [0, 0], sizes = [8, 8], strides = [1, 1]} : vector<16x8xf32> to vector<8x8xf32>
    %47 = vector.extract_strided_slice %43 {offsets = [8, 0], sizes = [8, 8], strides = [1, 1]} : vector<16x8xf32> to vector<8x8xf32>
    %48 = vector.extract_strided_slice %42 {offsets = [0, 0], sizes = [8, 8], strides = [1, 1]} : vector<16x8xf32> to vector<8x8xf32>
    %49 = vector.extract_strided_slice %42 {offsets = [8, 0], sizes = [8, 8], strides = [1, 1]} : vector<16x8xf32> to vector<8x8xf32>
    %c0_29 = arith.constant 0 : index
    %c0_30 = arith.constant 0 : index
    %50 = vector.load %arg5[%c0_29, %c0_30] : memref<24x8xf32, #tpu.memory_space<vmem>>, vector<8x8xf32>
    %c8 = arith.constant 8 : index
    %c0_31 = arith.constant 0 : index
    %51 = vector.load %arg5[%c8, %c0_31] : memref<24x8xf32, #tpu.memory_space<vmem>>, vector<8x8xf32>
    %c16 = arith.constant 16 : index
    %c0_32 = arith.constant 0 : index
    %52 = vector.load %arg5[%c16, %c0_32] : memref<24x8xf32, #tpu.memory_space<vmem>>, vector<8x8xf32>
    %53 = arith.mulf %46, %50 : vector<8x8xf32>
    %54 = arith.addf %44, %53 : vector<8x8xf32>
    %55 = math.tanh %54 : vector<8x8xf32>
    %56 = arith.mulf %50, %50 : vector<8x8xf32>
    %cst_33 = arith.constant -5.000000e-01 : f32
    %57 = vector.broadcast %cst_33 : f32 to vector<8x8xf32>
    %58 = arith.mulf %57, %56 : vector<8x8xf32>
    %59 = arith.subf %58, %48 : vector<8x8xf32>
    %60 = arith.mulf %55, %55 : vector<8x8xf32>
    %cst_34 = arith.constant 1.000000e+00 : f32
    %61 = vector.broadcast %cst_34 : f32 to vector<8x8xf32>
    %62 = arith.subf %61, %60 : vector<8x8xf32>
    %cst_35 = arith.constant 9.99999997E-7 : f32
    %63 = vector.broadcast %cst_35 : f32 to vector<8x8xf32>
    %64 = arith.addf %62, %63 : vector<8x8xf32>
    %65 = math.log %64 : vector<8x8xf32>
    %66 = arith.subf %59, %65 : vector<8x8xf32>
    %cst_36 = arith.constant dense<0.000000e+00> : vector<8xf32>
    %67 = vector.multi_reduction <add>, %66, %cst_36 [1] : vector<8x8xf32> to vector<8xf32>
    %68 = vector.shape_cast %67 : vector<8xf32> to vector<8x1xf32>
    %cst_37 = arith.constant 7.35150814 : f32
    %69 = vector.broadcast %cst_37 : f32 to vector<8x1xf32>
    %70 = arith.subf %68, %69 : vector<8x1xf32>
    %71 = arith.mulf %47, %51 : vector<8x8xf32>
    %72 = arith.addf %45, %71 : vector<8x8xf32>
    %73 = math.tanh %72 : vector<8x8xf32>
    %74 = arith.mulf %51, %51 : vector<8x8xf32>
    %cst_38 = arith.constant -5.000000e-01 : f32
    %75 = vector.broadcast %cst_38 : f32 to vector<8x8xf32>
    %76 = arith.mulf %75, %74 : vector<8x8xf32>
    %77 = arith.subf %76, %49 : vector<8x8xf32>
    %78 = arith.mulf %73, %73 : vector<8x8xf32>
    %cst_39 = arith.constant 1.000000e+00 : f32
    %79 = vector.broadcast %cst_39 : f32 to vector<8x8xf32>
    %80 = arith.subf %79, %78 : vector<8x8xf32>
    %cst_40 = arith.constant 9.99999997E-7 : f32
    %81 = vector.broadcast %cst_40 : f32 to vector<8x8xf32>
    %82 = arith.addf %80, %81 : vector<8x8xf32>
    %83 = math.log %82 : vector<8x8xf32>
    %84 = arith.subf %77, %83 : vector<8x8xf32>
    %cst_41 = arith.constant dense<0.000000e+00> : vector<8xf32>
    %85 = vector.multi_reduction <add>, %84, %cst_41 [1] : vector<8x8xf32> to vector<8xf32>
    %86 = vector.shape_cast %85 : vector<8xf32> to vector<8x1xf32>
    %cst_42 = arith.constant 7.35150814 : f32
    %87 = vector.broadcast %cst_42 : f32 to vector<8x1xf32>
    %88 = arith.subf %86, %87 : vector<8x1xf32>
    %89 = arith.mulf %47, %52 : vector<8x8xf32>
    %90 = arith.addf %45, %89 : vector<8x8xf32>
    %91 = math.tanh %90 : vector<8x8xf32>
    %92 = arith.mulf %52, %52 : vector<8x8xf32>
    %cst_43 = arith.constant -5.000000e-01 : f32
    %93 = vector.broadcast %cst_43 : f32 to vector<8x8xf32>
    %94 = arith.mulf %93, %92 : vector<8x8xf32>
    %95 = arith.subf %94, %49 : vector<8x8xf32>
    %96 = arith.mulf %91, %91 : vector<8x8xf32>
    %cst_44 = arith.constant 1.000000e+00 : f32
    %97 = vector.broadcast %cst_44 : f32 to vector<8x8xf32>
    %98 = arith.subf %97, %96 : vector<8x8xf32>
    %cst_45 = arith.constant 9.99999997E-7 : f32
    %99 = vector.broadcast %cst_45 : f32 to vector<8x8xf32>
    %100 = arith.addf %98, %99 : vector<8x8xf32>
    %101 = math.log %100 : vector<8x8xf32>
    %102 = arith.subf %95, %101 : vector<8x8xf32>
    %cst_46 = arith.constant dense<0.000000e+00> : vector<8xf32>
    %103 = vector.multi_reduction <add>, %102, %cst_46 [1] : vector<8x8xf32> to vector<8xf32>
    %104 = vector.shape_cast %103 : vector<8xf32> to vector<8x1xf32>
    %cst_47 = arith.constant 7.35150814 : f32
    %105 = vector.broadcast %cst_47 : f32 to vector<8x1xf32>
    %106 = arith.subf %104, %105 : vector<8x1xf32>
    %c0_48 = arith.constant 0 : index
    %c0_49 = arith.constant 0 : index
    %107 = vector.load %arg22[%c0_48, %c0_49] : memref<16x64xf32, #tpu.memory_space<vmem>>, vector<16x64xf32>
    %108 = arith.truncf %2 : vector<8x16xf32> to vector<8x16xbf16>
    %109 = arith.truncf %107 : vector<16x64xf32> to vector<16x64xbf16>
    %cst_50 = arith.constant dense<0.000000e+00> : vector<8x64xf32>
    %110 = tpu.matmul %108, %109, %cst_50 {dimension_numbers = #tpu.dot_dimension_numbers<[1], [0], [0], [1], [0, 0, 1, 1], [], []>} : vector<8x16xbf16>, vector<16x64xbf16>, vector<8x64xf32> -> vector<8x64xf32>
    %c0_51 = arith.constant 0 : index
    %c0_52 = arith.constant 0 : index
    %111 = vector.load %arg23[%c0_51, %c0_52] : memref<8x64xf32, #tpu.memory_space<vmem>>, vector<8x64xf32>
    %112 = arith.truncf %55 : vector<8x8xf32> to vector<8x8xbf16>
    %113 = arith.truncf %111 : vector<8x64xf32> to vector<8x64xbf16>
    %cst_53 = arith.constant dense<0.000000e+00> : vector<8x64xf32>
    %114 = tpu.matmul %112, %113, %cst_53 {dimension_numbers = #tpu.dot_dimension_numbers<[1], [0], [0], [1], [0, 0, 1, 1], [], []>} : vector<8x8xbf16>, vector<8x64xbf16>, vector<8x64xf32> -> vector<8x64xf32>
    %115 = arith.addf %110, %114 : vector<8x64xf32>
    %c0_54 = arith.constant 0 : index
    %c0_55 = arith.constant 0 : index
    %116 = vector.load %arg24[%c0_54, %c0_55] : memref<1x64xf32, #tpu.memory_space<vmem>>, vector<1x64xf32>
    %117 = vector.broadcast %116 : vector<1x64xf32> to vector<8x64xf32>
    %118 = arith.addf %115, %117 : vector<8x64xf32>
    %cst_56 = arith.constant 0.000000e+00 : f32
    %119 = vector.broadcast %cst_56 : f32 to vector<8x64xf32>
    %120 = arith.maximumf %118, %119 : vector<8x64xf32>
    %c0_57 = arith.constant 0 : index
    %c0_58 = arith.constant 0 : index
    %121 = vector.load %arg25[%c0_57, %c0_58] : memref<64x64xf32, #tpu.memory_space<vmem>>, vector<64x64xf32>
    %122 = arith.truncf %120 : vector<8x64xf32> to vector<8x64xbf16>
    %123 = arith.truncf %121 : vector<64x64xf32> to vector<64x64xbf16>
    %cst_59 = arith.constant dense<0.000000e+00> : vector<8x64xf32>
    %124 = tpu.matmul %122, %123, %cst_59 {dimension_numbers = #tpu.dot_dimension_numbers<[1], [0], [0], [1], [0, 0, 1, 1], [], []>} : vector<8x64xbf16>, vector<64x64xbf16>, vector<8x64xf32> -> vector<8x64xf32>
    %c0_60 = arith.constant 0 : index
    %c0_61 = arith.constant 0 : index
    %125 = vector.load %arg26[%c0_60, %c0_61] : memref<1x64xf32, #tpu.memory_space<vmem>>, vector<1x64xf32>
    %126 = vector.broadcast %125 : vector<1x64xf32> to vector<8x64xf32>
    %127 = arith.addf %124, %126 : vector<8x64xf32>
    %cst_62 = arith.constant 0.000000e+00 : f32
    %128 = vector.broadcast %cst_62 : f32 to vector<8x64xf32>
    %129 = arith.maximumf %127, %128 : vector<8x64xf32>
    %c0_63 = arith.constant 0 : index
    %c0_64 = arith.constant 0 : index
    %130 = vector.load %arg27[%c0_63, %c0_64] : memref<64x2xf32, #tpu.memory_space<vmem>>, vector<64x2xf32>
    %131 = arith.truncf %129 : vector<8x64xf32> to vector<8x64xbf16>
    %132 = arith.truncf %130 : vector<64x2xf32> to vector<64x2xbf16>
    %cst_65 = arith.constant dense<0.000000e+00> : vector<8x2xf32>
    %133 = tpu.matmul %131, %132, %cst_65 {dimension_numbers = #tpu.dot_dimension_numbers<[1], [0], [0], [1], [0, 0, 1, 1], [], []>} : vector<8x64xbf16>, vector<64x2xbf16>, vector<8x2xf32> -> vector<8x2xf32>
    %c0_66 = arith.constant 0 : index
    %c0_67 = arith.constant 0 : index
    %134 = vector.load %arg28[%c0_66, %c0_67] : memref<1x2xf32, #tpu.memory_space<vmem>>, vector<1x2xf32>
    %135 = vector.broadcast %134 : vector<1x2xf32> to vector<8x2xf32>
    %136 = arith.addf %133, %135 : vector<8x2xf32>
    %137 = tpu.concatenate %0, %0 in 0 : vector<8x16xf32>, vector<8x16xf32> -> vector<16x16xf32>
    %138 = tpu.concatenate %1, %73 in 0 : vector<8x8xf32>, vector<8x8xf32> -> vector<16x8xf32>
    %c0_68 = arith.constant 0 : index
    %c0_69 = arith.constant 0 : index
    %139 = vector.load %arg15[%c0_68, %c0_69] : memref<16x64xf32, #tpu.memory_space<vmem>>, vector<16x64xf32>
    %140 = arith.truncf %137 : vector<16x16xf32> to vector<16x16xbf16>
    %141 = arith.truncf %139 : vector<16x64xf32> to vector<16x64xbf16>
    %cst_70 = arith.constant dense<0.000000e+00> : vector<16x64xf32>
    %142 = tpu.matmul %140, %141, %cst_70 {dimension_numbers = #tpu.dot_dimension_numbers<[1], [0], [0], [1], [0, 0, 1, 1], [], []>} : vector<16x16xbf16>, vector<16x64xbf16>, vector<16x64xf32> -> vector<16x64xf32>
    %c0_71 = arith.constant 0 : index
    %c0_72 = arith.constant 0 : index
    %143 = vector.load %arg16[%c0_71, %c0_72] : memref<8x64xf32, #tpu.memory_space<vmem>>, vector<8x64xf32>
    %144 = arith.truncf %138 : vector<16x8xf32> to vector<16x8xbf16>
    %145 = arith.truncf %143 : vector<8x64xf32> to vector<8x64xbf16>
    %cst_73 = arith.constant dense<0.000000e+00> : vector<16x64xf32>
    %146 = tpu.matmul %144, %145, %cst_73 {dimension_numbers = #tpu.dot_dimension_numbers<[1], [0], [0], [1], [0, 0, 1, 1], [], []>} : vector<16x8xbf16>, vector<8x64xbf16>, vector<16x64xf32> -> vector<16x64xf32>
    %147 = arith.addf %142, %146 : vector<16x64xf32>
    %c0_74 = arith.constant 0 : index
    %c0_75 = arith.constant 0 : index
    %148 = vector.load %arg17[%c0_74, %c0_75] : memref<1x64xf32, #tpu.memory_space<vmem>>, vector<1x64xf32>
    %149 = vector.broadcast %148 : vector<1x64xf32> to vector<16x64xf32>
    %150 = arith.addf %147, %149 : vector<16x64xf32>
    %cst_76 = arith.constant 0.000000e+00 : f32
    %151 = vector.broadcast %cst_76 : f32 to vector<16x64xf32>
    %152 = arith.maximumf %150, %151 : vector<16x64xf32>
    %c0_77 = arith.constant 0 : index
    %c0_78 = arith.constant 0 : index
    %153 = vector.load %arg18[%c0_77, %c0_78] : memref<64x64xf32, #tpu.memory_space<vmem>>, vector<64x64xf32>
    %154 = arith.truncf %152 : vector<16x64xf32> to vector<16x64xbf16>
    %155 = arith.truncf %153 : vector<64x64xf32> to vector<64x64xbf16>
    %cst_79 = arith.constant dense<0.000000e+00> : vector<16x64xf32>
    %156 = tpu.matmul %154, %155, %cst_79 {dimension_numbers = #tpu.dot_dimension_numbers<[1], [0], [0], [1], [0, 0, 1, 1], [], []>} : vector<16x64xbf16>, vector<64x64xbf16>, vector<16x64xf32> -> vector<16x64xf32>
    %c0_80 = arith.constant 0 : index
    %c0_81 = arith.constant 0 : index
    %157 = vector.load %arg19[%c0_80, %c0_81] : memref<1x64xf32, #tpu.memory_space<vmem>>, vector<1x64xf32>
    %158 = vector.broadcast %157 : vector<1x64xf32> to vector<16x64xf32>
    %159 = arith.addf %156, %158 : vector<16x64xf32>
    %cst_82 = arith.constant 0.000000e+00 : f32
    %160 = vector.broadcast %cst_82 : f32 to vector<16x64xf32>
    %161 = arith.maximumf %159, %160 : vector<16x64xf32>
    %c0_83 = arith.constant 0 : index
    %c0_84 = arith.constant 0 : index
    %162 = vector.load %arg20[%c0_83, %c0_84] : memref<64x2xf32, #tpu.memory_space<vmem>>, vector<64x2xf32>
    %163 = arith.truncf %161 : vector<16x64xf32> to vector<16x64xbf16>
    %164 = arith.truncf %162 : vector<64x2xf32> to vector<64x2xbf16>
    %cst_85 = arith.constant dense<0.000000e+00> : vector<16x2xf32>
    %165 = tpu.matmul %163, %164, %cst_85 {dimension_numbers = #tpu.dot_dimension_numbers<[1], [0], [0], [1], [0, 0, 1, 1], [], []>} : vector<16x64xbf16>, vector<64x2xbf16>, vector<16x2xf32> -> vector<16x2xf32>
    %c0_86 = arith.constant 0 : index
    %c0_87 = arith.constant 0 : index
    %166 = vector.load %arg21[%c0_86, %c0_87] : memref<1x2xf32, #tpu.memory_space<vmem>>, vector<1x2xf32>
    %167 = vector.broadcast %166 : vector<1x2xf32> to vector<16x2xf32>
    %168 = arith.addf %165, %167 : vector<16x2xf32>
    %c0_88 = arith.constant 0 : index
    %169 = memref.load %arg6[%c0_88] : memref<1xf32, #tpu.memory_space<smem>>
    %170 = vector.broadcast %169 : f32 to vector<1x1xf32>
    %171 = math.exp %170 : vector<1x1xf32>
    %cst_89 = arith.constant dense<0x7F800000> : vector<8xf32>
    %172 = vector.multi_reduction <minimumf>, %136, %cst_89 [1] : vector<8x2xf32> to vector<8xf32>
    %173 = vector.shape_cast %172 : vector<8xf32> to vector<8x1xf32>
    %174 = vector.broadcast %171 : vector<1x1xf32> to vector<8x1xf32>
    %175 = arith.mulf %174, %70 : vector<8x1xf32>
    %176 = arith.subf %173, %175 : vector<8x1xf32>
    %c0_90 = arith.constant 0 : index
    %c0_91 = arith.constant 0 : index
    %177 = vector.load %arg2[%c0_90, %c0_91] : memref<8x1xf32, #tpu.memory_space<vmem>>, vector<8x1xf32>
    %c0_92 = arith.constant 0 : index
    %c0_93 = arith.constant 0 : index
    %178 = vector.load %arg3[%c0_92, %c0_93] : memref<8x1xf32, #tpu.memory_space<vmem>>, vector<8x1xf32>
    %cst_94 = arith.constant 1.000000e+00 : f32
    %179 = vector.broadcast %cst_94 : f32 to vector<8x1xf32>
    %180 = arith.subf %179, %178 : vector<8x1xf32>
    %cst_95 = arith.constant 9.900000e-01 : f32
    %181 = vector.broadcast %cst_95 : f32 to vector<8x1xf32>
    %182 = arith.mulf %180, %181 : vector<8x1xf32>
    %183 = arith.mulf %182, %176 : vector<8x1xf32>
    %184 = arith.addf %177, %183 : vector<8x1xf32>
    %185 = vector.extract_strided_slice %168 {offsets = [0, 0], sizes = [8, 2], strides = [1, 1]} : vector<16x2xf32> to vector<8x2xf32>
    %186 = vector.broadcast %184 : vector<8x1xf32> to vector<8x2xf32>
    %187 = arith.subf %185, %186 : vector<8x2xf32>
    %188 = arith.mulf %187, %187 : vector<8x2xf32>
    %189 = vector.shape_cast %188 : vector<8x2xf32> to vector<1x8x2xf32>
    %cst_96 = arith.constant dense<0.000000e+00> : vector<1xf32>
    %190 = vector.multi_reduction <add>, %189, %cst_96 [1, 2] : vector<1x8x2xf32> to vector<1xf32>
    %191 = vector.shape_cast %190 : vector<1xf32> to vector<1x1x1xf32>
    %192 = vector.extract %191[0, 0, 0] : f32 from vector<1x1x1xf32>
    %193 = vector.broadcast %192 : f32 to vector<1x1xf32>
    %cst_97 = arith.constant 1.250000e-01 : f32
    %194 = vector.broadcast %cst_97 : f32 to vector<1x1xf32>
    %195 = arith.mulf %193, %194 : vector<1x1xf32>
    %196 = vector.extract_strided_slice %168 {offsets = [8, 0], sizes = [8, 2], strides = [1, 1]} : vector<16x2xf32> to vector<8x2xf32>
    %cst_98 = arith.constant dense<0x7F800000> : vector<8xf32>
    %197 = vector.multi_reduction <minimumf>, %196, %cst_98 [1] : vector<8x2xf32> to vector<8xf32>
    %198 = vector.shape_cast %197 : vector<8xf32> to vector<8x1xf32>
    %199 = vector.broadcast %171 : vector<1x1xf32> to vector<8x1xf32>
    %200 = arith.mulf %199, %88 : vector<8x1xf32>
    %201 = arith.subf %200, %198 : vector<8x1xf32>
    %202 = vector.shape_cast %201 : vector<8x1xf32> to vector<1x8x1xf32>
    %cst_99 = arith.constant dense<0.000000e+00> : vector<1xf32>
    %203 = vector.multi_reduction <add>, %202, %cst_99 [1, 2] : vector<1x8x1xf32> to vector<1xf32>
    %204 = vector.shape_cast %203 : vector<1xf32> to vector<1x1x1xf32>
    %205 = vector.extract %204[0, 0, 0] : f32 from vector<1x1x1xf32>
    %206 = vector.broadcast %205 : f32 to vector<1x1xf32>
    %cst_100 = arith.constant 1.250000e-01 : f32
    %207 = vector.broadcast %cst_100 : f32 to vector<1x1xf32>
    %208 = arith.mulf %206, %207 : vector<1x1xf32>
    %cst_101 = arith.constant 0.000000e+00 : f32
    %209 = vector.broadcast %cst_101 : f32 to vector<1x1xf32>
    %210 = arith.subf %209, %171 : vector<1x1xf32>
    %cst_102 = arith.constant -8.000000e+00 : f32
    %211 = vector.broadcast %cst_102 : f32 to vector<8x1xf32>
    %212 = arith.addf %106, %211 : vector<8x1xf32>
    %213 = vector.broadcast %210 : vector<1x1xf32> to vector<8x1xf32>
    %214 = arith.mulf %213, %212 : vector<8x1xf32>
    %215 = vector.shape_cast %214 : vector<8x1xf32> to vector<1x8x1xf32>
    %cst_103 = arith.constant dense<0.000000e+00> : vector<1xf32>
    %216 = vector.multi_reduction <add>, %215, %cst_103 [1, 2] : vector<1x8x1xf32> to vector<1xf32>
    %217 = vector.shape_cast %216 : vector<1xf32> to vector<1x1x1xf32>
    %218 = vector.extract %217[0, 0, 0] : f32 from vector<1x1x1xf32>
    %219 = vector.broadcast %218 : f32 to vector<1x1xf32>
    %cst_104 = arith.constant 1.250000e-01 : f32
    %220 = vector.broadcast %cst_104 : f32 to vector<1x1xf32>
    %221 = arith.mulf %219, %220 : vector<1x1xf32>
    %222 = vector.shape_cast %184 : vector<8x1xf32> to vector<1x8x1xf32>
    %cst_105 = arith.constant dense<0.000000e+00> : vector<1xf32>
    %223 = vector.multi_reduction <add>, %222, %cst_105 [1, 2] : vector<1x8x1xf32> to vector<1xf32>
    %224 = vector.shape_cast %223 : vector<1xf32> to vector<1x1x1xf32>
    %225 = vector.extract %224[0, 0, 0] : f32 from vector<1x1x1xf32>
    %226 = vector.broadcast %225 : f32 to vector<1x1xf32>
    %cst_106 = arith.constant 1.250000e-01 : f32
    %227 = vector.broadcast %cst_106 : f32 to vector<1x1xf32>
    %228 = arith.mulf %226, %227 : vector<1x1xf32>
    %229 = vector.shape_cast %106 : vector<8x1xf32> to vector<1x8x1xf32>
    %cst_107 = arith.constant dense<0.000000e+00> : vector<1xf32>
    %230 = vector.multi_reduction <add>, %229, %cst_107 [1, 2] : vector<1x8x1xf32> to vector<1xf32>
    %231 = vector.shape_cast %230 : vector<1xf32> to vector<1x1x1xf32>
    %232 = vector.extract %231[0, 0, 0] : f32 from vector<1x1x1xf32>
    %233 = vector.broadcast %232 : f32 to vector<1x1xf32>
    %cst_108 = arith.constant 1.250000e-01 : f32
    %234 = vector.broadcast %cst_108 : f32 to vector<1x1xf32>
    %235 = arith.mulf %233, %234 : vector<1x1xf32>
    %236 = tpu.iota {dimensions = array<i32: 1>} : vector<1x128xi32>
    %c0_i32 = arith.constant 0 : i32
    %237 = vector.broadcast %c0_i32 : i32 to vector<1x128xi32>
    %238 = arith.cmpi eq, %236, %237 : vector<1x128xi32>
    %cst_109 = arith.constant 0.000000e+00 : f32
    %239 = vector.shape_cast %195 : vector<1x1xf32> to vector<1x1xf32>
    %240 = vector.broadcast %239 : vector<1x1xf32> to vector<1x128xf32>
    %241 = vector.broadcast %cst_109 : f32 to vector<1x128xf32>
    %242 = arith.select %238, %240, %241 : vector<1x128xi1>, vector<1x128xf32>
    %c1_i32 = arith.constant 1 : i32
    %243 = vector.broadcast %c1_i32 : i32 to vector<1x128xi32>
    %244 = arith.cmpi eq, %236, %243 : vector<1x128xi32>
    %245 = vector.shape_cast %208 : vector<1x1xf32> to vector<1x1xf32>
    %246 = vector.broadcast %245 : vector<1x1xf32> to vector<1x128xf32>
    %247 = arith.select %244, %246, %242 : vector<1x128xi1>, vector<1x128xf32>
    %c2_i32 = arith.constant 2 : i32
    %248 = vector.broadcast %c2_i32 : i32 to vector<1x128xi32>
    %249 = arith.cmpi eq, %236, %248 : vector<1x128xi32>
    %250 = vector.shape_cast %221 : vector<1x1xf32> to vector<1x1xf32>
    %251 = vector.broadcast %250 : vector<1x1xf32> to vector<1x128xf32>
    %252 = arith.select %249, %251, %247 : vector<1x128xi1>, vector<1x128xf32>
    %c3_i32 = arith.constant 3 : i32
    %253 = vector.broadcast %c3_i32 : i32 to vector<1x128xi32>
    %254 = arith.cmpi eq, %236, %253 : vector<1x128xi32>
    %255 = vector.shape_cast %228 : vector<1x1xf32> to vector<1x1xf32>
    %256 = vector.broadcast %255 : vector<1x1xf32> to vector<1x128xf32>
    %257 = arith.select %254, %256, %252 : vector<1x128xi1>, vector<1x128xf32>
    %c4_i32 = arith.constant 4 : i32
    %258 = vector.broadcast %c4_i32 : i32 to vector<1x128xi32>
    %259 = arith.cmpi eq, %236, %258 : vector<1x128xi32>
    %260 = vector.shape_cast %235 : vector<1x1xf32> to vector<1x1xf32>
    %261 = vector.broadcast %260 : vector<1x1xf32> to vector<1x128xf32>
    %262 = arith.select %259, %261, %257 : vector<1x128xi1>, vector<1x128xf32>
    %c0_110 = arith.constant 0 : index
    %c0_111 = arith.constant 0 : index
    %263 = vector.load %arg29[%c0_110, %c0_111] : memref<1x128xf32, #tpu.memory_space<vmem>>, vector<1x128xf32>
    tpu.vector_store %arg29[%c0_110, %c0_111], %262 {strides = array<i32>} : memref<1x128xf32, #tpu.memory_space<vmem>>, vector<1x128xf32>,
    %c0_112 = arith.constant 0 : index
    %c0_113 = arith.constant 0 : index
    %264 = vector.load %arg15[%c0_112, %c0_113] : memref<16x64xf32, #tpu.memory_space<vmem>>, vector<16x64xf32>
    %cst_114 = arith.constant 5.000000e-03 : f32
    %265 = vector.broadcast %cst_114 : f32 to vector<16x64xf32>
    %266 = arith.mulf %265, %264 : vector<16x64xf32>
    %c0_115 = arith.constant 0 : index
    %c0_116 = arith.constant 0 : index
    %267 = vector.load %arg22[%c0_115, %c0_116] : memref<16x64xf32, #tpu.memory_space<vmem>>, vector<16x64xf32>
    %cst_117 = arith.constant 9.950000e-01 : f32
    %268 = vector.broadcast %cst_117 : f32 to vector<16x64xf32>
    %269 = arith.mulf %268, %267 : vector<16x64xf32>
    %270 = arith.addf %266, %269 : vector<16x64xf32>
    %c0_118 = arith.constant 0 : index
    %c0_119 = arith.constant 0 : index
    %271 = vector.load %arg30[%c0_118, %c0_119] : memref<16x64xf32, #tpu.memory_space<vmem>>, vector<16x64xf32>
    tpu.vector_store %arg30[%c0_118, %c0_119], %270 {strides = array<i32>} : memref<16x64xf32, #tpu.memory_space<vmem>>, vector<16x64xf32>,
    %c0_120 = arith.constant 0 : index
    %c0_121 = arith.constant 0 : index
    %272 = vector.load %arg16[%c0_120, %c0_121] : memref<8x64xf32, #tpu.memory_space<vmem>>, vector<8x64xf32>
    %cst_122 = arith.constant 5.000000e-03 : f32
    %273 = vector.broadcast %cst_122 : f32 to vector<8x64xf32>
    %274 = arith.mulf %273, %272 : vector<8x64xf32>
    %c0_123 = arith.constant 0 : index
    %c0_124 = arith.constant 0 : index
    %275 = vector.load %arg23[%c0_123, %c0_124] : memref<8x64xf32, #tpu.memory_space<vmem>>, vector<8x64xf32>
    %cst_125 = arith.constant 9.950000e-01 : f32
    %276 = vector.broadcast %cst_125 : f32 to vector<8x64xf32>
    %277 = arith.mulf %276, %275 : vector<8x64xf32>
    %278 = arith.addf %274, %277 : vector<8x64xf32>
    %c0_126 = arith.constant 0 : index
    %c0_127 = arith.constant 0 : index
    %279 = vector.load %arg31[%c0_126, %c0_127] : memref<8x64xf32, #tpu.memory_space<vmem>>, vector<8x64xf32>
    tpu.vector_store %arg31[%c0_126, %c0_127], %278 {strides = array<i32>} : memref<8x64xf32, #tpu.memory_space<vmem>>, vector<8x64xf32>,
    %c0_128 = arith.constant 0 : index
    %c0_129 = arith.constant 0 : index
    %280 = vector.load %arg17[%c0_128, %c0_129] : memref<1x64xf32, #tpu.memory_space<vmem>>, vector<1x64xf32>
    %cst_130 = arith.constant 5.000000e-03 : f32
    %281 = vector.broadcast %cst_130 : f32 to vector<1x64xf32>
    %282 = arith.mulf %281, %280 : vector<1x64xf32>
    %c0_131 = arith.constant 0 : index
    %c0_132 = arith.constant 0 : index
    %283 = vector.load %arg24[%c0_131, %c0_132] : memref<1x64xf32, #tpu.memory_space<vmem>>, vector<1x64xf32>
    %cst_133 = arith.constant 9.950000e-01 : f32
    %284 = vector.broadcast %cst_133 : f32 to vector<1x64xf32>
    %285 = arith.mulf %284, %283 : vector<1x64xf32>
    %286 = arith.addf %282, %285 : vector<1x64xf32>
    %c0_134 = arith.constant 0 : index
    %c0_135 = arith.constant 0 : index
    %287 = vector.load %arg32[%c0_134, %c0_135] : memref<1x64xf32, #tpu.memory_space<vmem>>, vector<1x64xf32>
    tpu.vector_store %arg32[%c0_134, %c0_135], %286 {strides = array<i32>} : memref<1x64xf32, #tpu.memory_space<vmem>>, vector<1x64xf32>,
    %c0_136 = arith.constant 0 : index
    %c0_137 = arith.constant 0 : index
    %288 = vector.load %arg18[%c0_136, %c0_137] : memref<64x64xf32, #tpu.memory_space<vmem>>, vector<64x64xf32>
    %cst_138 = arith.constant 5.000000e-03 : f32
    %289 = vector.broadcast %cst_138 : f32 to vector<64x64xf32>
    %290 = arith.mulf %289, %288 : vector<64x64xf32>
    %c0_139 = arith.constant 0 : index
    %c0_140 = arith.constant 0 : index
    %291 = vector.load %arg25[%c0_139, %c0_140] : memref<64x64xf32, #tpu.memory_space<vmem>>, vector<64x64xf32>
    %cst_141 = arith.constant 9.950000e-01 : f32
    %292 = vector.broadcast %cst_141 : f32 to vector<64x64xf32>
    %293 = arith.mulf %292, %291 : vector<64x64xf32>
    %294 = arith.addf %290, %293 : vector<64x64xf32>
    %c0_142 = arith.constant 0 : index
    %c0_143 = arith.constant 0 : index
    %295 = vector.load %arg33[%c0_142, %c0_143] : memref<64x64xf32, #tpu.memory_space<vmem>>, vector<64x64xf32>
    tpu.vector_store %arg33[%c0_142, %c0_143], %294 {strides = array<i32>} : memref<64x64xf32, #tpu.memory_space<vmem>>, vector<64x64xf32>,
    %c0_144 = arith.constant 0 : index
    %c0_145 = arith.constant 0 : index
    %296 = vector.load %arg19[%c0_144, %c0_145] : memref<1x64xf32, #tpu.memory_space<vmem>>, vector<1x64xf32>
    %cst_146 = arith.constant 5.000000e-03 : f32
    %297 = vector.broadcast %cst_146 : f32 to vector<1x64xf32>
    %298 = arith.mulf %297, %296 : vector<1x64xf32>
    %c0_147 = arith.constant 0 : index
    %c0_148 = arith.constant 0 : index
    %299 = vector.load %arg26[%c0_147, %c0_148] : memref<1x64xf32, #tpu.memory_space<vmem>>, vector<1x64xf32>
    %cst_149 = arith.constant 9.950000e-01 : f32
    %300 = vector.broadcast %cst_149 : f32 to vector<1x64xf32>
    %301 = arith.mulf %300, %299 : vector<1x64xf32>
    %302 = arith.addf %298, %301 : vector<1x64xf32>
    %c0_150 = arith.constant 0 : index
    %c0_151 = arith.constant 0 : index
    %303 = vector.load %arg34[%c0_150, %c0_151] : memref<1x64xf32, #tpu.memory_space<vmem>>, vector<1x64xf32>
    tpu.vector_store %arg34[%c0_150, %c0_151], %302 {strides = array<i32>} : memref<1x64xf32, #tpu.memory_space<vmem>>, vector<1x64xf32>,
    %c0_152 = arith.constant 0 : index
    %c0_153 = arith.constant 0 : index
    %304 = vector.load %arg20[%c0_152, %c0_153] : memref<64x2xf32, #tpu.memory_space<vmem>>, vector<64x2xf32>
    %cst_154 = arith.constant 5.000000e-03 : f32
    %305 = vector.broadcast %cst_154 : f32 to vector<64x2xf32>
    %306 = arith.mulf %305, %304 : vector<64x2xf32>
    %c0_155 = arith.constant 0 : index
    %c0_156 = arith.constant 0 : index
    %307 = vector.load %arg27[%c0_155, %c0_156] : memref<64x2xf32, #tpu.memory_space<vmem>>, vector<64x2xf32>
    %cst_157 = arith.constant 9.950000e-01 : f32
    %308 = vector.broadcast %cst_157 : f32 to vector<64x2xf32>
    %309 = arith.mulf %308, %307 : vector<64x2xf32>
    %310 = arith.addf %306, %309 : vector<64x2xf32>
    %c0_158 = arith.constant 0 : index
    %c0_159 = arith.constant 0 : index
    %311 = vector.load %arg35[%c0_158, %c0_159] : memref<64x2xf32, #tpu.memory_space<vmem>>, vector<64x2xf32>
    tpu.vector_store %arg35[%c0_158, %c0_159], %310 {strides = array<i32>} : memref<64x2xf32, #tpu.memory_space<vmem>>, vector<64x2xf32>,
    %c0_160 = arith.constant 0 : index
    %c0_161 = arith.constant 0 : index
    %312 = vector.load %arg21[%c0_160, %c0_161] : memref<1x2xf32, #tpu.memory_space<vmem>>, vector<1x2xf32>
    %cst_162 = arith.constant 5.000000e-03 : f32
    %313 = vector.broadcast %cst_162 : f32 to vector<1x2xf32>
    %314 = arith.mulf %313, %312 : vector<1x2xf32>
    %c0_163 = arith.constant 0 : index
    %c0_164 = arith.constant 0 : index
    %315 = vector.load %arg28[%c0_163, %c0_164] : memref<1x2xf32, #tpu.memory_space<vmem>>, vector<1x2xf32>
    %cst_165 = arith.constant 9.950000e-01 : f32
    %316 = vector.broadcast %cst_165 : f32 to vector<1x2xf32>
    %317 = arith.mulf %316, %315 : vector<1x2xf32>
    %318 = arith.addf %314, %317 : vector<1x2xf32>
    %c0_166 = arith.constant 0 : index
    %c0_167 = arith.constant 0 : index
    %319 = vector.load %arg36[%c0_166, %c0_167] : memref<1x2xf32, #tpu.memory_space<vmem>>, vector<1x2xf32>
    tpu.vector_store %arg36[%c0_166, %c0_167], %318 {strides = array<i32>} : memref<1x2xf32, #tpu.memory_space<vmem>>, vector<1x2xf32>,
    return
  }
}

</mosaic_0001>

<llo_original>
// kernel: sac_forward.1
$region0: #{sac_forward.1}
  #allocation0 [shape = 'u32[]', space=smem, size = 0x4, offset = 0x4, fixed_abs, tag = 'smem constant byte address 0x4 - core index']
  #allocation1 [shape = 'u32[72,128]{1,0:T(1,128)}', space=vmem, size = 0x9000, scoped, tag = 'internal scratch']
  #allocation2 [shape = 'f32[1]{0:T(128)S(6)}', space=smem, size = 0x200, scoped, tag = 'scoped memory for sac_forward.1']
  %s0 = inlined_call_operand.smem [shape: u32[37], index: -1, kind: input, shape index: {}]
  %s1 = sld [smem:[%s0]]
  %s2 = scalar_lea.smem %s0, 1
  %s3 = sld [smem:[%s2]]
  %s4 = scalar_lea.smem %s0, 2
  %s5 = sld [smem:[%s4]]
  %s6 = scalar_lea.smem %s0, 3
  %s7 = sld [smem:[%s6]]
  %s8 = scalar_lea.smem %s0, 4
  %s9 = sld [smem:[%s8]]
  %s10 = scalar_lea.smem %s0, 5
  %s11 = sld [smem:[%s10]]
  %s12 = scalar_lea.smem %s0, 6
  %s13 = sld [smem:[%s12]]
  %s14 = scalar_lea.smem %s0, 7
  %s15 = sld [smem:[%s14]]
  %s16 = scalar_lea.smem %s0, 8
  %s17 = sld [smem:[%s16]]
  %s18 = scalar_lea.smem %s0, 9
  %s19 = sld [smem:[%s18]]
  %s20 = scalar_lea.smem %s0, 10
  %s21 = sld [smem:[%s20]]
  %s22 = scalar_lea.smem %s0, 11
  %s23 = sld [smem:[%s22]]
  %s24 = scalar_lea.smem %s0, 12
  %s25 = sld [smem:[%s24]]
  %s26 = scalar_lea.smem %s0, 13
  %s27 = sld [smem:[%s26]]
  %s28 = scalar_lea.smem %s0, 14
  %s29 = sld [smem:[%s28]]
  %s30 = scalar_lea.smem %s0, 15
  %s31 = sld [smem:[%s30]]
  %s32 = scalar_lea.smem %s0, 16
  %s33 = sld [smem:[%s32]]
  %s34 = scalar_lea.smem %s0, 17
  %s35 = sld [smem:[%s34]]
  %s36 = scalar_lea.smem %s0, 18
  %s37 = sld [smem:[%s36]]
  %s38 = scalar_lea.smem %s0, 19
  %s39 = sld [smem:[%s38]]
  %s40 = scalar_lea.smem %s0, 20
  %s41 = sld [smem:[%s40]]
  %s42 = scalar_lea.smem %s0, 21
  %s43 = sld [smem:[%s42]]
  %s44 = scalar_lea.smem %s0, 22
  %s45 = sld [smem:[%s44]]
  %s46 = scalar_lea.smem %s0, 23
  %s47 = sld [smem:[%s46]]
  %s48 = scalar_lea.smem %s0, 24
  %s49 = sld [smem:[%s48]]
  %s50 = scalar_lea.smem %s0, 25
  %s51 = sld [smem:[%s50]]
  %s52 = scalar_lea.smem %s0, 26
  %s53 = sld [smem:[%s52]]
  %s54 = scalar_lea.smem %s0, 27
  %s55 = sld [smem:[%s54]]
  %s56 = scalar_lea.smem %s0, 28
  %s57 = sld [smem:[%s56]]
  %s58 = scalar_lea.smem %s0, 29
  %s59 = sld [smem:[%s58]]
  %s60 = scalar_lea.smem %s0, 30
  %s61 = sld [smem:[%s60]]
  %s62 = scalar_lea.smem %s0, 31
  %s63 = sld [smem:[%s62]]
  %s64 = scalar_lea.smem %s0, 32
  %s65 = sld [smem:[%s64]]
  %s66 = scalar_lea.smem %s0, 33
  %s67 = sld [smem:[%s66]]
  %s68 = scalar_lea.smem %s0, 34
  %s69 = sld [smem:[%s68]]
  %s70 = scalar_lea.smem %s0, 35
  %s71 = sld [smem:[%s70]]
  %s72 = scalar_lea.smem %s0, 36
  %s73 = sld [smem:[%s72]]
  %74 = xla_tuple %s59, %s61, %s63, %s65, %s67, %s69, %s71, %s73
  %s75 = sld [smem:[#allocation0]]
  $region182: #{sac_forward.1} parent=0
    _
  %s77 = ssub.s32 1, %s75
  %s78 = scalar_select 0, %s77, %s75
  %79 = sst [smem:[#allocation2]] %s13
  // Predicated region
  $region2: #{sac_forward.1} parent=0 // pred_check
    _
  $region3: #{sac_forward.1} parent=0 // pred_check_branch
    %81 = sbr.rel (0) target = $region5
  $region4: #{sac_forward.1} parent=0 // pred_region
    _
  $region5: #{sac_forward.1} parent=0 // pred_fallthru
    _
  // Predicated region
  $region6: #{sac_forward.1} parent=0 // pred_check
    _
  $region7: #{sac_forward.1} parent=0 // pred_check_branch
    %83 = sbr.rel (0) target = $region9
  $region8: #{sac_forward.1} parent=0 // pred_region
    _
  $region9: #{sac_forward.1} parent=0 // pred_fallthru
    _
  // Predicated region
  $region10: #{sac_forward.1} parent=0 // pred_check
    _
  $region11: #{sac_forward.1} parent=0 // pred_check_branch
    %85 = sbr.rel (0) target = $region13
  $region12: #{sac_forward.1} parent=0 // pred_region
    _
  $region13: #{sac_forward.1} parent=0 // pred_fallthru
    _
  // Predicated region
  $region14: #{sac_forward.1} parent=0 // pred_check
    _
  $region15: #{sac_forward.1} parent=0 // pred_check_branch
    %87 = sbr.rel (0) target = $region17
  $region16: #{sac_forward.1} parent=0 // pred_region
    _
  $region17: #{sac_forward.1} parent=0 // pred_fallthru
    _
  // Predicated region
  $region18: #{sac_forward.1} parent=0 // pred_check
    _
  $region19: #{sac_forward.1} parent=0 // pred_check_branch
    %89 = sbr.rel (0) target = $region21
  $region20: #{sac_forward.1} parent=0 // pred_region
    _
  $region21: #{sac_forward.1} parent=0 // pred_fallthru
    _
  // Predicated region
  $region22: #{sac_forward.1} parent=0 // pred_check
    _
  $region23: #{sac_forward.1} parent=0 // pred_check_branch
    %91 = sbr.rel (0) target = $region25
  $region24: #{sac_forward.1} parent=0 // pred_region
    _
  $region25: #{sac_forward.1} parent=0 // pred_fallthru
    _
  // Predicated region
  $region26: #{sac_forward.1} parent=0 // pred_check
    _
  $region27: #{sac_forward.1} parent=0 // pred_check_branch
    %93 = sbr.rel (0) target = $region29
  $region28: #{sac_forward.1} parent=0 // pred_region
    _
  $region29: #{sac_forward.1} parent=0 // pred_fallthru
    _
  // Predicated region
  $region30: #{sac_forward.1} parent=0 // pred_check
    _
  $region31: #{sac_forward.1} parent=0 // pred_check_branch
    %95 = sbr.rel (0) target = $region33
  $region32: #{sac_forward.1} parent=0 // pred_region
    _
  $region33: #{sac_forward.1} parent=0 // pred_fallthru
    _
  // Predicated region
  $region34: #{sac_forward.1} parent=0 // pred_check
    _
  $region35: #{sac_forward.1} parent=0 // pred_check_branch
    %97 = sbr.rel (0) target = $region37
  $region36: #{sac_forward.1} parent=0 // pred_region
    _
  $region37: #{sac_forward.1} parent=0 // pred_fallthru
    _
  // Predicated region
  $region38: #{sac_forward.1} parent=0 // pred_check
    _
  $region39: #{sac_forward.1} parent=0 // pred_check_branch
    %99 = sbr.rel (0) target = $region41
  $region40: #{sac_forward.1} parent=0 // pred_region
    _
  $region41: #{sac_forward.1} parent=0 // pred_fallthru
    _
  // Predicated region
  $region42: #{sac_forward.1} parent=0 // pred_check
    _
  $region43: #{sac_forward.1} parent=0 // pred_check_branch
    %101 = sbr.rel (0) target = $region45
  $region44: #{sac_forward.1} parent=0 // pred_region
    _
  $region45: #{sac_forward.1} parent=0 // pred_fallthru
    _
  // Predicated region
  $region46: #{sac_forward.1} parent=0 // pred_check
    _
  $region47: #{sac_forward.1} parent=0 // pred_check_branch
    %103 = sbr.rel (0) target = $region49
  $region48: #{sac_forward.1} parent=0 // pred_region
    _
  $region49: #{sac_forward.1} parent=0 // pred_fallthru
    _
  // Predicated region
  $region50: #{sac_forward.1} parent=0 // pred_check
    _
  $region51: #{sac_forward.1} parent=0 // pred_check_branch
    %105 = sbr.rel (0) target = $region53
  $region52: #{sac_forward.1} parent=0 // pred_region
    _
  $region53: #{sac_forward.1} parent=0 // pred_fallthru
    _
  // Predicated region
  $region54: #{sac_forward.1} parent=0 // pred_check
    _
  $region55: #{sac_forward.1} parent=0 // pred_check_branch
    %107 = sbr.rel (0) target = $region57
  $region56: #{sac_forward.1} parent=0 // pred_region
    _
  $region57: #{sac_forward.1} parent=0 // pred_fallthru
    _
  // Predicated region
  $region58: #{sac_forward.1} parent=0 // pred_check
    _
  $region59: #{sac_forward.1} parent=0 // pred_check_branch
    %109 = sbr.rel (0) target = $region61
  $region60: #{sac_forward.1} parent=0 // pred_region
    _
  $region61: #{sac_forward.1} parent=0 // pred_fallthru
    _
  // Predicated region
  $region62: #{sac_forward.1} parent=0 // pred_check
    _
  $region63: #{sac_forward.1} parent=0 // pred_check_branch
    %111 = sbr.rel (0) target = $region65
  $region64: #{sac_forward.1} parent=0 // pred_region
    _
  $region65: #{sac_forward.1} parent=0 // pred_fallthru
    _
  // Predicated region
  $region66: #{sac_forward.1} parent=0 // pred_check
    _
  $region67: #{sac_forward.1} parent=0 // pred_check_branch
    %113 = sbr.rel (0) target = $region69
  $region68: #{sac_forward.1} parent=0 // pred_region
    _
  $region69: #{sac_forward.1} parent=0 // pred_fallthru
    _
  // Predicated region
  $region70: #{sac_forward.1} parent=0 // pred_check
    _
  $region71: #{sac_forward.1} parent=0 // pred_check_branch
    %115 = sbr.rel (0) target = $region73
  $region72: #{sac_forward.1} parent=0 // pred_region
    _
  $region73: #{sac_forward.1} parent=0 // pred_fallthru
    _
  // Predicated region
  $region74: #{sac_forward.1} parent=0 // pred_check
    _
  $region75: #{sac_forward.1} parent=0 // pred_check_branch
    %117 = sbr.rel (0) target = $region77
  $region76: #{sac_forward.1} parent=0 // pred_region
    _
  $region77: #{sac_forward.1} parent=0 // pred_fallthru
    _
  // Predicated region
  $region78: #{sac_forward.1} parent=0 // pred_check
    _
  $region79: #{sac_forward.1} parent=0 // pred_check_branch
    %119 = sbr.rel (0) target = $region81
  $region80: #{sac_forward.1} parent=0 // pred_region
    _
  $region81: #{sac_forward.1} parent=0 // pred_fallthru
    _
  // Predicated region
  $region82: #{sac_forward.1} parent=0 // pred_check
    _
  $region83: #{sac_forward.1} parent=0 // pred_check_branch
    %121 = sbr.rel (0) target = $region85
  $region84: #{sac_forward.1} parent=0 // pred_region
    _
  $region85: #{sac_forward.1} parent=0 // pred_fallthru
    _
  // Predicated region
  $region86: #{sac_forward.1} parent=0 // pred_check
    _
  $region87: #{sac_forward.1} parent=0 // pred_check_branch
    %123 = sbr.rel (0) target = $region89
  $region88: #{sac_forward.1} parent=0 // pred_region
    _
  $region89: #{sac_forward.1} parent=0 // pred_fallthru
    _
  // Predicated region
  $region90: #{sac_forward.1} parent=0 // pred_check
    _
  $region91: #{sac_forward.1} parent=0 // pred_check_branch
    %125 = sbr.rel (0) target = $region93
  $region92: #{sac_forward.1} parent=0 // pred_region
    _
  $region93: #{sac_forward.1} parent=0 // pred_fallthru
    _
  // Predicated region
  $region94: #{sac_forward.1} parent=0 // pred_check
    _
  $region95: #{sac_forward.1} parent=0 // pred_check_branch
    %127 = sbr.rel (0) target = $region97
  $region96: #{sac_forward.1} parent=0 // pred_region
    _
  $region97: #{sac_forward.1} parent=0 // pred_fallthru
    _
  // Predicated region
  $region98: #{sac_forward.1} parent=0 // pred_check
    _
  $region99: #{sac_forward.1} parent=0 // pred_check_branch
    %129 = sbr.rel (0) target = $region101
  $region100: #{sac_forward.1} parent=0 // pred_region
    _
  $region101: #{sac_forward.1} parent=0 // pred_fallthru
    _
  // Predicated region
  $region102: #{sac_forward.1} parent=0 // pred_check
    _
  $region103: #{sac_forward.1} parent=0 // pred_check_branch
    %131 = sbr.rel (0) target = $region105
  $region104: #{sac_forward.1} parent=0 // pred_region
    _
  $region105: #{sac_forward.1} parent=0 // pred_fallthru
    _
  // Predicated region
  $region106: #{sac_forward.1} parent=0 // pred_check
    _
  $region107: #{sac_forward.1} parent=0 // pred_check_branch
    %133 = sbr.rel (0) target = $region109
  $region108: #{sac_forward.1} parent=0 // pred_region
    _
  $region109: #{sac_forward.1} parent=0 // pred_fallthru
    _
  // Predicated region
  $region110: #{sac_forward.1} parent=0 // pred_check
    _
  $region111: #{sac_forward.1} parent=0 // pred_check_branch
    %135 = sbr.rel (0) target = $region113
  $region112: #{sac_forward.1} parent=0 // pred_region
    _
  $region113: #{sac_forward.1} parent=0 // pred_fallthru
    _
  // Predicated region
  $region114: #{sac_forward.1} parent=0 // pred_check
    _
  $region115: #{sac_forward.1} parent=0 // pred_check_branch
    %137 = sbr.rel (0) target = $region117
  $region116: #{sac_forward.1} parent=0 // pred_region
    _
  $region117: #{sac_forward.1} parent=0 // pred_fallthru
    _
  %v139 = vld [vmem:[%s1] sm:$0xff]
  %v140 = vld [vmem:[%s3] sm:$0xff]
  %v141 = vld [vmem:[%s9] sm:$0xff]
  %v142 = vld [vmem:[%s15] sm:$0xff]
  %v143 = vld [vmem:[%s15 + $0x8] sm:$0xff]
  %v144 = vpack.c.bf16 %v139, %v141
  %v145 = vpack.c.bf16 %v143, %v142
  %v146 = vld [vmem:[%s17] sm:$0x1]
  %v148 = vperm.slane %v146, 0
  %vm150 = vcmask 130048
  %v152 = vsel %vm150, %v144, 0
  %154 = vmatpush.bf16.msra.mxu0 0
  %155 = vmatpush.bf16.msra.mxu0 0
  %156 = vmatpush.bf16.msra.mxu0 0
  %157 = vmatpush.bf16.msra.mxu0 0
  %158 = vmatpush.bf16.msra.mxu0 0
  %159 = vmatpush.bf16.msra.mxu0 0
  %160 = vmatpush.bf16.msra.mxu0 0
  %161 = vmatpush.bf16.msra.mxu0 %v145
  %162 = vmatmul.bf16.gmra.mxu0 %v152
  %v163 = vpop.f32.mrf.mxu0
  %v164 = vadd.f32 %v148, %v163
  %v165 = vpop.f32.mrf.mxu0
  %v166 = vadd.f32 %v148, %v165
  %167 = vdwg.mxu0
  %v168 = vmax.f32 %v164, 0.0
  %v169 = vmax.f32 %v166, 0.0
  %v170 = vld [vmem:[%s19] sm:$0xff]
  %v171 = vld [vmem:[%s19 + $0x8] sm:$0xff]
  %v172 = vld [vmem:[%s19 + $0x10] sm:$0xff]
  %v173 = vld [vmem:[%s19 + $0x18] sm:$0xff]
  %v174 = vpack.c.bf16 %v169, %v168
  %v175 = vpack.c.bf16 %v171, %v170
  %v176 = vpack.c.bf16 %v173, %v172
  %v177 = vld [vmem:[%s21] sm:$0x1]
  %v179 = vperm.slane %v177, 0
  %vm181 = vcmask 261120
  %v183 = vsel %vm181, %v174, 0
  %185 = vmatpush.bf16.msra.mxu0 0
  %186 = vmatpush.bf16.msra.mxu0 0
  %187 = vmatpush.bf16.msra.mxu0 0
  %188 = vmatpush.bf16.msra.mxu0 0
  %189 = vmatpush.bf16.msra.mxu0 0
  %190 = vmatpush.bf16.msra.mxu0 0
  %191 = vmatpush.bf16.msra.mxu0 %v176
  %192 = vmatpush.bf16.msra.mxu0 %v175
  %193 = vmatmul.bf16.gmra.mxu0 %v183
  %v194 = vpop.f32.mrf.mxu0
  %v195 = vadd.f32 %v179, %v194
  %v196 = vpop.f32.mrf.mxu0
  %v197 = vadd.f32 %v179, %v196
  %198 = vdwg.mxu0
  %v199 = vmax.f32 %v195, 0.0
  %v200 = vmax.f32 %v197, 0.0
  %v201 = vld [vmem:[%s23] sm:$0xff]
  %v202 = vld [vmem:[%s23 + $0x8] sm:$0xff]
  %v203 = vld [vmem:[%s23 + $0x10] sm:$0xff]
  %v204 = vld [vmem:[%s23 + $0x18] sm:$0xff]
  %v205 = vpack.c.bf16 %v200, %v199
  %v206 = vpack.c.bf16 %v202, %v201
  %v207 = vpack.c.bf16 %v204, %v203
  %v208 = vld [vmem:[%s25] sm:$0x1]
  %v210 = vperm.slane %v208, 0
  %v213 = vsel %vm181, %v205, 0
  %215 = vmatpush.bf16.msra.mxu0 0
  %216 = vmatpush.bf16.msra.mxu0 0
  %217 = vmatpush.bf16.msra.mxu0 0
  %218 = vmatpush.bf16.msra.mxu0 0
  %219 = vmatpush.bf16.msra.mxu0 0
  %220 = vmatpush.bf16.msra.mxu0 0
  %221 = vmatpush.bf16.msra.mxu0 %v207
  %222 = vmatpush.bf16.msra.mxu0 %v206
  %223 = vmatmul.bf16.gmra.mxu0 %v213
  %v224 = vpop.f32.mrf.mxu0
  %v225 = vadd.f32 %v210, %v224
  %v226 = vpop.f32.mrf.mxu0
  %v227 = vadd.f32 %v210, %v226
  %228 = vdwg.mxu0
  %v229 = vld [vmem:[%s27] sm:$0xff]
  %v230 = vld [vmem:[%s27 + $0x8] sm:$0xff]
  %v231 = vld [vmem:[%s27 + $0x10] sm:$0xff]
  %v232 = vld [vmem:[%s27 + $0x18] sm:$0xff]
  %v233 = vpack.c.bf16 %v230, %v229
  %v234 = vpack.c.bf16 %v232, %v231
  %v235 = vld [vmem:[%s29] sm:$0x1]
  %v237 = vperm.slane %v235, 0
  %239 = vmatpush.bf16.msra.mxu0 0
  %240 = vmatpush.bf16.msra.mxu0 0
  %241 = vmatpush.bf16.msra.mxu0 0
  %242 = vmatpush.bf16.msra.mxu0 0
  %243 = vmatpush.bf16.msra.mxu0 0
  %244 = vmatpush.bf16.msra.mxu0 0
  %245 = vmatpush.bf16.msra.mxu0 %v234
  %246 = vmatpush.bf16.msra.mxu0 %v233
  %247 = vmatmul.bf16.gmra.mxu0 %v213
  %v248 = vpop.f32.mrf.mxu0
  %v249 = vadd.f32 %v237, %v248
  %v250 = vpop.f32.mrf.mxu0
  %v251 = vadd.f32 %v237, %v250
  %252 = vdwg.mxu0
  %v253 = vtanh.pop %v249
  %v254 = vtanh.pop %v251
  %v255 = vadd.f32 %v253, 1.0
  %v256 = vadd.f32 %v254, 1.0
  %v257 = vmul.f32 %v255, 3.5
  %v258 = vmul.f32 %v256, 3.5
  %v259 = vadd.f32 %v257, -5.0
  %v260 = vadd.f32 %v258, -5.0
  %v261 = vmul.f32 %v259, 1.442695
  %v262 = vpow.pop %v261
  %v263 = vmul.f32 %v260, 1.442695
  %v264 = vpow.pop %v263
  %v265 = vld [vmem:[%s11] sm:$0xff]
  %v266 = vld [vmem:[%s11 + $0x8] sm:$0xff]
  %v267 = vld [vmem:[%s11 + $0x10] sm:$0xff]
  %v268 = vmul.f32 %v262, %v265
  %v269 = vadd.f32 %v225, %v268
  %v270 = vtanh.pop %v269
  %v271 = vmul.f32 %v265, %v265
  %v272 = vmul.f32 %v271, -0.5
  %v273 = vsub.f32 %v272, %v259
  %v274 = vmul.f32 %v270, %v270
  %v275 = vsub.f32 1.0, %v274
  %v276 = vadd.f32 %v275, 1e-06
  %v277 = vlog2.pop %v276
  %v278 = vmul.f32 %v277, 0.6931472
  %v279 = vsub.f32 %v273, %v278
  %vm280 = vcmask 64512
  %v281 = vsel %vm280, %v279, 0.0
  %282 = vadd.xlane.f32.xlu0 %v281
  %v283 = vpop.xlane.xlu0 %282
  %v284 = vsub.f32 %v283, 7.351508
  %v285 = vmul.f32 %v264, %v266
  %v286 = vadd.f32 %v227, %v285
  %v287 = vtanh.pop %v286
  %v288 = vmul.f32 %v266, %v266
  %v289 = vmul.f32 %v288, -0.5
  %v290 = vsub.f32 %v289, %v260
  %v291 = vmul.f32 %v287, %v287
  %v292 = vsub.f32 1.0, %v291
  %v293 = vadd.f32 %v292, 1e-06
  %v294 = vlog2.pop %v293
  %v295 = vmul.f32 %v294, 0.6931472
  %v296 = vsub.f32 %v290, %v295
  %v297 = vsel %vm280, %v296, 0.0
  %298 = vadd.xlane.f32.xlu0 %v297
  %v299 = vpop.xlane.xlu0 %298
  %v300 = vsub.f32 %v299, 7.351508
  %v301 = vmul.f32 %v264, %v267
  %v302 = vadd.f32 %v227, %v301
  %v303 = vtanh.pop %v302
  %v304 = vmul.f32 %v267, %v267
  %v305 = vmul.f32 %v304, -0.5
  %v306 = vsub.f32 %v305, %v260
  %v307 = vmul.f32 %v303, %v303
  %v308 = vsub.f32 1.0, %v307
  %v309 = vadd.f32 %v308, 1e-06
  %v310 = vlog2.pop %v309
  %v311 = vmul.f32 %v310, 0.6931472
  %v312 = vsub.f32 %v306, %v311
  %v313 = vsel %vm280, %v312, 0.0
  %314 = vadd.xlane.f32.xlu0 %v313
  %v315 = vpop.xlane.xlu0 %314
  %v316 = vsub.f32 %v315, 7.351508
  %v317 = vld [vmem:[%s45] sm:$0xff]
  %v318 = vld [vmem:[%s45 + $0x8] sm:$0xff]
  %v319 = vpack.c.bf16 %v141, %v141
  %v320 = vpack.c.bf16 %v318, %v317
  %v321 = vld [vmem:[%s47] sm:$0xff]
  %v322 = vpack.c.bf16 %v270, %v270
  %v323 = vpack.c.bf16 %v321, %v321
  %v325 = vsel %vm280, %v322, 0
  %vm327 = vcmask 1043456
  %v329 = vsel %vm327, %v323, 0
  %331 = vmatpush.bf16.msra.mxu0 0
  %332 = vmatpush.bf16.msra.mxu0 0
  %333 = vmatpush.bf16.msra.mxu0 0
  %334 = vmatpush.bf16.msra.mxu0 0
  %335 = vmatpush.bf16.msra.mxu0 0
  %336 = vmatpush.bf16.msra.mxu0 0
  %337 = vmatpush.bf16.msra.mxu0 0
  %338 = vmatpush.bf16.msra.mxu0 %v329
  %339 = vmatmul.bf16.gmra.mxu0 %v325
  %v340 = vpop.f32.mrf.mxu0
  %v341 = vadd.f32 0.0, %v340
  %v342 = vpop.f32.mrf.mxu0
  %343 = vdwg.mxu0
  %v345 = vsel %vm150, %v319, 0
  %347 = vmatpush.bf16.msra.mxu0 0
  %348 = vmatpush.bf16.msra.mxu0 0
  %349 = vmatpush.bf16.msra.mxu0 0
  %350 = vmatpush.bf16.msra.mxu0 0
  %351 = vmatpush.bf16.msra.mxu0 0
  %352 = vmatpush.bf16.msra.mxu0 0
  %353 = vmatpush.bf16.msra.mxu0 0
  %354 = vmatpush.bf16.msra.mxu0 %v320
  %355 = vmatmul.bf16.gmra.mxu0 %v345
  %v356 = vpop.f32.mrf.mxu0
  %v357 = vadd.f32 %v341, %v356
  %v358 = vpop.f32.mrf.mxu0
  %359 = vdwg.mxu0
  %v360 = vld [vmem:[%s49] sm:$0x1]
  %v362 = vperm.slane %v360, 0
  %v364 = vadd.f32 %v357, %v362
  %v365 = vmax.f32 %v364, 0.0
  %v366 = vld [vmem:[%s51] sm:$0xff]
  %v367 = vld [vmem:[%s51 + $0x8] sm:$0xff]
  %v368 = vld [vmem:[%s51 + $0x10] sm:$0xff]
  %v369 = vld [vmem:[%s51 + $0x18] sm:$0xff]
  %v370 = vld [vmem:[%s51 + $0x20] sm:$0xff]
  %v371 = vld [vmem:[%s51 + $0x28] sm:$0xff]
  %v372 = vld [vmem:[%s51 + $0x30] sm:$0xff]
  %v373 = vld [vmem:[%s51 + $0x38] sm:$0xff]
  %v374 = vpack.c.bf16 %v365, %v365
  %v375 = vpack.c.bf16 %v367, %v366
  %v376 = vpack.c.bf16 %v369, %v368
  %v377 = vpack.c.bf16 %v371, %v370
  %v378 = vpack.c.bf16 %v373, %v372
  %v379 = vld [vmem:[%s53] sm:$0x1]
  %v381 = vperm.slane %v379, 0
  %vm383 = vcmask 523264
  %v385 = vsel %vm383, %v374, 0
  %387 = vmatpush.bf16.msra.mxu0 0
  %388 = vmatpush.bf16.msra.mxu0 0
  %389 = vmatpush.bf16.msra.mxu0 0
  %390 = vmatpush.bf16.msra.mxu0 0
  %391 = vmatpush.bf16.msra.mxu0 %v378
  %392 = vmatpush.bf16.msra.mxu0 %v377
  %393 = vmatpush.bf16.msra.mxu0 %v376
  %394 = vmatpush.bf16.msra.mxu0 %v375
  %395 = vmatmul.bf16.gmra.mxu0 %v385
  %v396 = vpop.f32.mrf.mxu0
  %v397 = vadd.f32 %v381, %v396
  %v398 = vpop.f32.mrf.mxu0
  %399 = vdwg.mxu0
  %v400 = vmax.f32 %v397, 0.0
  %v401 = vld [vmem:[%s55] sm:$0xff]
  %v402 = vld [vmem:[%s55 + $0x8] sm:$0xff]
  %v403 = vld [vmem:[%s55 + $0x10] sm:$0xff]
  %v404 = vld [vmem:[%s55 + $0x18] sm:$0xff]
  %v405 = vld [vmem:[%s55 + $0x20] sm:$0xff]
  %v406 = vld [vmem:[%s55 + $0x28] sm:$0xff]
  %v407 = vld [vmem:[%s55 + $0x30] sm:$0xff]
  %v408 = vld [vmem:[%s55 + $0x38] sm:$0xff]
  %v409 = vpack.c.bf16 %v400, %v400
  %v410 = vpack.c.bf16 %v402, %v401
  %v411 = vpack.c.bf16 %v404, %v403
  %v412 = vpack.c.bf16 %v406, %v405
  %v413 = vpack.c.bf16 %v408, %v407
  %v414 = vld [vmem:[%s57] sm:$0x1]
  %v416 = vperm.slane %v414, 0
  %v419 = vsel %vm383, %v409, 0
  %421 = vmatpush.bf16.msra.mxu0 0
  %422 = vmatpush.bf16.msra.mxu0 0
  %423 = vmatpush.bf16.msra.mxu0 0
  %424 = vmatpush.bf16.msra.mxu0 0
  %425 = vmatpush.bf16.msra.mxu0 %v413
  %426 = vmatpush.bf16.msra.mxu0 %v412
  %427 = vmatpush.bf16.msra.mxu0 %v411
  %428 = vmatpush.bf16.msra.mxu0 %v410
  %429 = vmatmul.bf16.gmra.mxu0 %v419
  %v430 = vpop.f32.mrf.mxu0
  %v431 = vadd.f32 %v416, %v430
  %v432 = vpop.f32.mrf.mxu0
  %433 = vdwg.mxu0
  %v434 = vld [vmem:[%s31] sm:$0xff]
  %v435 = vld [vmem:[%s31 + $0x8] sm:$0xff]
  %v436 = vpack.c.bf16 %v139, %v139
  %v437 = vpack.c.bf16 %v435, %v434
  %v438 = vld [vmem:[%s33] sm:$0xff]
  %v439 = vpack.c.bf16 %v287, %v140
  %v440 = vpack.c.bf16 %v438, %v438
  %v442 = vsel %vm280, %v439, 0
  %v445 = vsel %vm327, %v440, 0
  %447 = vmatpush.bf16.msra.mxu0 0
  %448 = vmatpush.bf16.msra.mxu0 0
  %449 = vmatpush.bf16.msra.mxu0 0
  %450 = vmatpush.bf16.msra.mxu0 0
  %451 = vmatpush.bf16.msra.mxu0 0
  %452 = vmatpush.bf16.msra.mxu0 0
  %453 = vmatpush.bf16.msra.mxu0 0
  %454 = vmatpush.bf16.msra.mxu0 %v445
  %455 = vmatmul.bf16.gmra.mxu0 %v442
  %v456 = vpop.f32.mrf.mxu0
  %v457 = vadd.f32 0.0, %v456
  %v458 = vpop.f32.mrf.mxu0
  %v459 = vadd.f32 0.0, %v458
  %460 = vdwg.mxu0
  %v462 = vsel %vm150, %v436, 0
  %464 = vmatpush.bf16.msra.mxu0 0
  %465 = vmatpush.bf16.msra.mxu0 0
  %466 = vmatpush.bf16.msra.mxu0 0
  %467 = vmatpush.bf16.msra.mxu0 0
  %468 = vmatpush.bf16.msra.mxu0 0
  %469 = vmatpush.bf16.msra.mxu0 0
  %470 = vmatpush.bf16.msra.mxu0 0
  %471 = vmatpush.bf16.msra.mxu0 %v437
  %472 = vmatmul.bf16.gmra.mxu0 %v462
  %v473 = vpop.f32.mrf.mxu0
  %v474 = vadd.f32 %v457, %v473
  %v475 = vpop.f32.mrf.mxu0
  %v476 = vadd.f32 %v459, %v475
  %477 = vdwg.mxu0
  %v478 = vld [vmem:[%s35] sm:$0x1]
  %v480 = vperm.slane %v478, 0
  %v482 = vadd.f32 %v474, %v480
  %v483 = vadd.f32 %v476, %v480
  %v484 = vmax.f32 %v482, 0.0
  %v485 = vmax.f32 %v483, 0.0
  %v486 = vld [vmem:[%s37] sm:$0xff]
  %v487 = vld [vmem:[%s37 + $0x8] sm:$0xff]
  %v488 = vld [vmem:[%s37 + $0x10] sm:$0xff]
  %v489 = vld [vmem:[%s37 + $0x18] sm:$0xff]
  %v490 = vld [vmem:[%s37 + $0x20] sm:$0xff]
  %v491 = vld [vmem:[%s37 + $0x28] sm:$0xff]
  %v492 = vld [vmem:[%s37 + $0x30] sm:$0xff]
  %v493 = vld [vmem:[%s37 + $0x38] sm:$0xff]
  %v494 = vpack.c.bf16 %v485, %v484
  %v495 = vpack.c.bf16 %v487, %v486
  %v496 = vpack.c.bf16 %v489, %v488
  %v497 = vpack.c.bf16 %v491, %v490
  %v498 = vpack.c.bf16 %v493, %v492
  %v499 = vld [vmem:[%s39] sm:$0x1]
  %v501 = vperm.slane %v499, 0
  %v504 = vsel %vm383, %v494, 0
  %506 = vmatpush.bf16.msra.mxu0 0
  %507 = vmatpush.bf16.msra.mxu0 0
  %508 = vmatpush.bf16.msra.mxu0 0
  %509 = vmatpush.bf16.msra.mxu0 0
  %510 = vmatpush.bf16.msra.mxu0 %v498
  %511 = vmatpush.bf16.msra.mxu0 %v497
  %512 = vmatpush.bf16.msra.mxu0 %v496
  %513 = vmatpush.bf16.msra.mxu0 %v495
  %514 = vmatmul.bf16.gmra.mxu0 %v504
  %v515 = vpop.f32.mrf.mxu0
  %v516 = vadd.f32 %v501, %v515
  %v517 = vpop.f32.mrf.mxu0
  %v518 = vadd.f32 %v501, %v517
  %519 = vdwg.mxu0
  %v520 = vmax.f32 %v516, 0.0
  %v521 = vmax.f32 %v518, 0.0
  %v522 = vld [vmem:[%s41] sm:$0xff]
  %v523 = vld [vmem:[%s41 + $0x8] sm:$0xff]
  %v524 = vld [vmem:[%s41 + $0x10] sm:$0xff]
  %v525 = vld [vmem:[%s41 + $0x18] sm:$0xff]
  %v526 = vld [vmem:[%s41 + $0x20] sm:$0xff]
  %v527 = vld [vmem:[%s41 + $0x28] sm:$0xff]
  %v528 = vld [vmem:[%s41 + $0x30] sm:$0xff]
  %v529 = vld [vmem:[%s41 + $0x38] sm:$0xff]
  %v530 = vpack.c.bf16 %v521, %v520
  %v531 = vpack.c.bf16 %v523, %v522
  %v532 = vpack.c.bf16 %v525, %v524
  %v533 = vpack.c.bf16 %v527, %v526
  %v534 = vpack.c.bf16 %v529, %v528
  %v535 = vld [vmem:[%s43] sm:$0x1]
  %v537 = vperm.slane %v535, 0
  %v540 = vsel %vm383, %v530, 0
  %542 = vmatpush.bf16.msra.mxu0 0
  %543 = vmatpush.bf16.msra.mxu0 0
  %544 = vmatpush.bf16.msra.mxu0 0
  %545 = vmatpush.bf16.msra.mxu0 0
  %546 = vmatpush.bf16.msra.mxu0 %v534
  %547 = vmatpush.bf16.msra.mxu0 %v533
  %548 = vmatpush.bf16.msra.mxu0 %v532
  %549 = vmatpush.bf16.msra.mxu0 %v531
  %550 = vmatmul.bf16.gmra.mxu0 %v540
  %v551 = vpop.f32.mrf.mxu0
  %v552 = vadd.f32 %v537, %v551
  %v553 = vpop.f32.mrf.mxu0
  %v554 = vadd.f32 %v537, %v553
  %555 = vdwg.mxu0
  %s556 = sld [smem:[#allocation2]]
  %v557 = vstv %s556
  %v558 = vmul.f32 %v557, 1.442695
  %v559 = vpow.pop %v558
  %vm560 = vcmask 15360
  %v561 = vsel %vm560, %v431, inf
  %562 = vmin.xlane.f32.xlu0 %v561
  %v563 = vpop.xlane.xlu0 %562
  %v564 = vmul.f32 %v559, %v284
  %v565 = vsub.f32 %v563, %v564
  %v566 = vld [vmem:[%s5] sm:$0xff]
  %v567 = vld [vmem:[%s7] sm:$0xff]
  %v568 = vsub.f32 1.0, %v567
  %v569 = vmul.f32 %v568, 0.99
  %v570 = vmul.f32 %v569, %v565
  %v571 = vadd.f32 %v566, %v570
  %573 = vset.pattern.permute.xlu0 0
  %574 = vperm.xlu0 %573, %v571
  %v575 = vpop.permute.xlu0 %574
  %v577 = vsub.f32 %v552, %v575
  %v578 = vmul.f32 %v577, %v577
  %v579 = vsel %vm560, %v578, 0.0
  %580 = vadd.xlane.f32.xlu0 %v579
  %v581 = vpop.xlane.xlu0 %580
  %v582 = vrot.slane %v581, 4
  %v583 = vadd.f32 %v581, %v582
  %v584 = vrot.slane %v583, 2
  %v585 = vadd.f32 %v583, %v584
  %v586 = vrot.slane %v585, 1
  %v587 = vadd.f32 %v585, %v586
  %s588 = vtos %v587
  %v589 = vstv %s588
  %v590 = vmul.f32 %v589, 0.125
  %v591 = vsel %vm560, %v554, inf
  %592 = vmin.xlane.f32.xlu0 %v591
  %v593 = vpop.xlane.xlu0 %592
  %v594 = vmul.f32 %v559, %v300
  %v595 = vsub.f32 %v594, %v593
  %vm596 = vcmask 7168
  %v597 = vsel %vm596, %v595, 0.0
  %598 = vadd.xlane.f32.xlu0 %v597
  %v599 = vpop.xlane.xlu0 %598
  %v600 = vrot.slane %v599, 4
  %v601 = vadd.f32 %v599, %v600
  %v602 = vrot.slane %v601, 2
  %v603 = vadd.f32 %v601, %v602
  %v604 = vrot.slane %v603, 1
  %v605 = vadd.f32 %v603, %v604
  %s606 = vtos %v605
  %v607 = vstv %s606
  %v608 = vmul.f32 %v607, 0.125
  %v609 = vsub.f32 0.0, %v559
  %v610 = vadd.f32 %v316, -8.0
  %v611 = vmul.f32 %v609, %v610
  %v612 = vsel %vm596, %v611, 0.0
  %613 = vadd.xlane.f32.xlu0 %v612
  %v614 = vpop.xlane.xlu0 %613
  %v615 = vrot.slane %v614, 4
  %v616 = vadd.f32 %v614, %v615
  %v617 = vrot.slane %v616, 2
  %v618 = vadd.f32 %v616, %v617
  %v619 = vrot.slane %v618, 1
  %v620 = vadd.f32 %v618, %v619
  %s621 = vtos %v620
  %v622 = vstv %s621
  %v623 = vmul.f32 %v622, 0.125
  %v624 = vsel %vm596, %v571, 0.0
  %625 = vadd.xlane.f32.xlu0 %v624
  %v626 = vpop.xlane.xlu0 %625
  %v627 = vrot.slane %v626, 4
  %v628 = vadd.f32 %v626, %v627
  %v629 = vrot.slane %v628, 2
  %v630 = vadd.f32 %v628, %v629
  %v631 = vrot.slane %v630, 1
  %v632 = vadd.f32 %v630, %v631
  %s633 = vtos %v632
  %v634 = vstv %s633
  %v635 = vmul.f32 %v634, 0.125
  %v636 = vsel %vm596, %v316, 0.0
  %637 = vadd.xlane.f32.xlu0 %v636
  %v638 = vpop.xlane.xlu0 %637
  %v639 = vrot.slane %v638, 4
  %v640 = vadd.f32 %v638, %v639
  %v641 = vrot.slane %v640, 2
  %v642 = vadd.f32 %v640, %v641
  %v643 = vrot.slane %v642, 1
  %v644 = vadd.f32 %v642, %v643
  %s645 = vtos %v644
  %v646 = vstv %s645
  %v647 = vmul.f32 %v646, 0.125
  %v648 = vlaneseq
  %v649 = vand.u32 %v648, 127
  %vm650 = vcmp.eq.s32.totalorder %v649, 0
  %v651 = vsel %vm650, %v590, 0.0
  %vm652 = vcmp.eq.s32.totalorder %v649, 1
  %v653 = vsel %vm652, %v608, %v651
  %vm654 = vcmp.eq.s32.totalorder %v649, 2
  %v655 = vsel %vm654, %v623, %v653
  %vm656 = vcmp.eq.s32.totalorder %v649, 3
  %v657 = vsel %vm656, %v635, %v655
  %vm658 = vcmp.eq.s32.totalorder %v649, 4
  %v659 = vsel %vm658, %v647, %v657
  %660 = vst [vmem:[%s59] sm:$0x1] %v659
  %v661 = vld [vmem:[%s31] sm:$0xff]
  %v662 = vld [vmem:[%s31 + $0x8] sm:$0xff]
  %v663 = vmul.f32 %v661, 0.005
  %v664 = vmul.f32 %v662, 0.005
  %v665 = vld [vmem:[%s45] sm:$0xff]
  %v666 = vld [vmem:[%s45 + $0x8] sm:$0xff]
  %v667 = vmul.f32 %v665, 0.995
  %v668 = vmul.f32 %v666, 0.995
  %v669 = vadd.f32 %v663, %v667
  %v670 = vadd.f32 %v664, %v668
  %671 = vst.msk [vmem:[%s61] sm:$0xff] %vm383, %v669
  %672 = vst.msk [vmem:[%s61 + $0x8] sm:$0xff] %vm383, %v670
  %v673 = vld [vmem:[%s33] sm:$0xff]
  %v674 = vmul.f32 %v673, 0.005
  %v675 = vld [vmem:[%s47] sm:$0xff]
  %v676 = vmul.f32 %v675, 0.995
  %v677 = vadd.f32 %v674, %v676
  %678 = vst.msk [vmem:[%s63] sm:$0xff] %vm383, %v677
  %v679 = vld [vmem:[%s35] sm:$0x1]
  %v680 = vmul.f32 %v679, 0.005
  %v681 = vld [vmem:[%s49] sm:$0x1]
  %v682 = vmul.f32 %v681, 0.995
  %v683 = vadd.f32 %v680, %v682
  %vm684 = vcmask 516096
  %685 = vst.msk [vmem:[%s65] sm:$0x1] %vm684, %v683
  %v686 = vld [vmem:[%s37] sm:$0xff]
  %v687 = vld [vmem:[%s37 + $0x8] sm:$0xff]
  %v688 = vld [vmem:[%s37 + $0x10] sm:$0xff]
  %v689 = vld [vmem:[%s37 + $0x18] sm:$0xff]
  %v690 = vld [vmem:[%s37 + $0x20] sm:$0xff]
  %v691 = vld [vmem:[%s37 + $0x28] sm:$0xff]
  %v692 = vld [vmem:[%s37 + $0x30] sm:$0xff]
  %v693 = vld [vmem:[%s37 + $0x38] sm:$0xff]
  %v694 = vmul.f32 %v686, 0.005
  %v695 = vmul.f32 %v687, 0.005
  %v696 = vmul.f32 %v688, 0.005
  %v697 = vmul.f32 %v689, 0.005
  %v698 = vmul.f32 %v690, 0.005
  %v699 = vmul.f32 %v691, 0.005
  %v700 = vmul.f32 %v692, 0.005
  %v701 = vmul.f32 %v693, 0.005
  %v702 = vld [vmem:[%s51] sm:$0xff]
  %v703 = vld [vmem:[%s51 + $0x8] sm:$0xff]
  %v704 = vld [vmem:[%s51 + $0x10] sm:$0xff]
  %v705 = vld [vmem:[%s51 + $0x18] sm:$0xff]
  %v706 = vld [vmem:[%s51 + $0x20] sm:$0xff]
  %v707 = vld [vmem:[%s51 + $0x28] sm:$0xff]
  %v708 = vld [vmem:[%s51 + $0x30] sm:$0xff]
  %v709 = vld [vmem:[%s51 + $0x38] sm:$0xff]
  %v710 = vmul.f32 %v702, 0.995
  %v711 = vmul.f32 %v703, 0.995
  %v712 = vmul.f32 %v704, 0.995
  %v713 = vmul.f32 %v705, 0.995
  %v714 = vmul.f32 %v706, 0.995
  %v715 = vmul.f32 %v707, 0.995
  %v716 = vmul.f32 %v708, 0.995
  %v717 = vmul.f32 %v709, 0.995
  %v718 = vadd.f32 %v694, %v710
  %v719 = vadd.f32 %v695, %v711
  %v720 = vadd.f32 %v696, %v712
  %v721 = vadd.f32 %v697, %v713
  %v722 = vadd.f32 %v698, %v714
  %v723 = vadd.f32 %v699, %v715
  %v724 = vadd.f32 %v700, %v716
  %v725 = vadd.f32 %v701, %v717
  %726 = vst.msk [vmem:[%s67] sm:$0xff] %vm383, %v718
  %727 = vst.msk [vmem:[%s67 + $0x8] sm:$0xff] %vm383, %v719
  %728 = vst.msk [vmem:[%s67 + $0x10] sm:$0xff] %vm383, %v720
  %729 = vst.msk [vmem:[%s67 + $0x18] sm:$0xff] %vm383, %v721
  %730 = vst.msk [vmem:[%s67 + $0x20] sm:$0xff] %vm383, %v722
  %731 = vst.msk [vmem:[%s67 + $0x28] sm:$0xff] %vm383, %v723
  %732 = vst.msk [vmem:[%s67 + $0x30] sm:$0xff] %vm383, %v724
  %733 = vst.msk [vmem:[%s67 + $0x38] sm:$0xff] %vm383, %v725
  %v734 = vld [vmem:[%s39] sm:$0x1]
  %v735 = vmul.f32 %v734, 0.005
  %v736 = vld [vmem:[%s53] sm:$0x1]
  %v737 = vmul.f32 %v736, 0.995
  %v738 = vadd.f32 %v735, %v737
  %739 = vst.msk [vmem:[%s69] sm:$0x1] %vm684, %v738
  %v740 = vld [vmem:[%s41] sm:$0xff]
  %v741 = vld [vmem:[%s41 + $0x8] sm:$0xff]
  %v742 = vld [vmem:[%s41 + $0x10] sm:$0xff]
  %v743 = vld [vmem:[%s41 + $0x18] sm:$0xff]
  %v744 = vld [vmem:[%s41 + $0x20] sm:$0xff]
  %v745 = vld [vmem:[%s41 + $0x28] sm:$0xff]
  %v746 = vld [vmem:[%s41 + $0x30] sm:$0xff]
  %v747 = vld [vmem:[%s41 + $0x38] sm:$0xff]
  %v748 = vmul.f32 %v740, 0.005
  %v749 = vmul.f32 %v741, 0.005
  %v750 = vmul.f32 %v742, 0.005
  %v751 = vmul.f32 %v743, 0.005
  %v752 = vmul.f32 %v744, 0.005
  %v753 = vmul.f32 %v745, 0.005
  %v754 = vmul.f32 %v746, 0.005
  %v755 = vmul.f32 %v747, 0.005
  %v756 = vld [vmem:[%s55] sm:$0xff]
  %v757 = vld [vmem:[%s55 + $0x8] sm:$0xff]
  %v758 = vld [vmem:[%s55 + $0x10] sm:$0xff]
  %v759 = vld [vmem:[%s55 + $0x18] sm:$0xff]
  %v760 = vld [vmem:[%s55 + $0x20] sm:$0xff]
  %v761 = vld [vmem:[%s55 + $0x28] sm:$0xff]
  %v762 = vld [vmem:[%s55 + $0x30] sm:$0xff]
  %v763 = vld [vmem:[%s55 + $0x38] sm:$0xff]
  %v764 = vmul.f32 %v756, 0.995
  %v765 = vmul.f32 %v757, 0.995
  %v766 = vmul.f32 %v758, 0.995
  %v767 = vmul.f32 %v759, 0.995
  %v768 = vmul.f32 %v760, 0.995
  %v769 = vmul.f32 %v761, 0.995
  %v770 = vmul.f32 %v762, 0.995
  %v771 = vmul.f32 %v763, 0.995
  %v772 = vadd.f32 %v748, %v764
  %v773 = vadd.f32 %v749, %v765
  %v774 = vadd.f32 %v750, %v766
  %v775 = vadd.f32 %v751, %v767
  %v776 = vadd.f32 %v752, %v768
  %v777 = vadd.f32 %v753, %v769
  %v778 = vadd.f32 %v754, %v770
  %v779 = vadd.f32 %v755, %v771
  %780 = vst.msk [vmem:[%s71] sm:$0xff] %vm560, %v772
  %781 = vst.msk [vmem:[%s71 + $0x8] sm:$0xff] %vm560, %v773
  %782 = vst.msk [vmem:[%s71 + $0x10] sm:$0xff] %vm560, %v774
  %783 = vst.msk [vmem:[%s71 + $0x18] sm:$0xff] %vm560, %v775
  %784 = vst.msk [vmem:[%s71 + $0x20] sm:$0xff] %vm560, %v776
  %785 = vst.msk [vmem:[%s71 + $0x28] sm:$0xff] %vm560, %v777
  %786 = vst.msk [vmem:[%s71 + $0x30] sm:$0xff] %vm560, %v778
  %787 = vst.msk [vmem:[%s71 + $0x38] sm:$0xff] %vm560, %v779
  %v788 = vld [vmem:[%s43] sm:$0x1]
  %v789 = vmul.f32 %v788, 0.005
  %v790 = vld [vmem:[%s57] sm:$0x1]
  %v791 = vmul.f32 %v790, 0.995
  %v792 = vadd.f32 %v789, %v791
  %vm793 = vcmask 8192
  %794 = vst.msk [vmem:[%s73] sm:$0x1] %vm793, %v792
  // Predicated region
  $region118: #{sac_forward.1} parent=0 // pred_check
    _
  $region119: #{sac_forward.1} parent=0 // pred_check_branch
    %796 = sbr.rel (0) target = $region121
  $region120: #{sac_forward.1} parent=0 // pred_region
    _
  $region121: #{sac_forward.1} parent=0 // pred_fallthru
    _
  // Predicated region
  $region122: #{sac_forward.1} parent=0 // pred_check
    _
  $region123: #{sac_forward.1} parent=0 // pred_check_branch
    %798 = sbr.rel (0) target = $region125
  $region124: #{sac_forward.1} parent=0 // pred_region
    _
  $region125: #{sac_forward.1} parent=0 // pred_fallthru
    _
  // Predicated region
  $region126: #{sac_forward.1} parent=0 // pred_check
    _
  $region127: #{sac_forward.1} parent=0 // pred_check_branch
    %800 = sbr.rel (0) target = $region129
  $region128: #{sac_forward.1} parent=0 // pred_region
    _
  $region129: #{sac_forward.1} parent=0 // pred_fallthru
    _
  // Predicated region
  $region130: #{sac_forward.1} parent=0 // pred_check
    _
  $region131: #{sac_forward.1} parent=0 // pred_check_branch
    %802 = sbr.rel (0) target = $region133
  $region132: #{sac_forward.1} parent=0 // pred_region
    _
  $region133: #{sac_forward.1} parent=0 // pred_fallthru
    _
  // Predicated region
  $region134: #{sac_forward.1} parent=0 // pred_check
    _
  $region135: #{sac_forward.1} parent=0 // pred_check_branch
    %804 = sbr.rel (0) target = $region137
  $region136: #{sac_forward.1} parent=0 // pred_region
    _
  $region137: #{sac_forward.1} parent=0 // pred_fallthru
    _
  // Predicated region
  $region138: #{sac_forward.1} parent=0 // pred_check
    _
  $region139: #{sac_forward.1} parent=0 // pred_check_branch
    %806 = sbr.rel (0) target = $region141
  $region140: #{sac_forward.1} parent=0 // pred_region
    _
  $region141: #{sac_forward.1} parent=0 // pred_fallthru
    _
  // Predicated region
  $region142: #{sac_forward.1} parent=0 // pred_check
    _
  $region143: #{sac_forward.1} parent=0 // pred_check_branch
    %808 = sbr.rel (0) target = $region145
  $region144: #{sac_forward.1} parent=0 // pred_region
    _
  $region145: #{sac_forward.1} parent=0 // pred_fallthru
    _
  // Predicated region
  $region146: #{sac_forward.1} parent=0 // pred_check
    _
  $region147: #{sac_forward.1} parent=0 // pred_check_branch
    %810 = sbr.rel (0) target = $region149
  $region148: #{sac_forward.1} parent=0 // pred_region
    _
  $region149: #{sac_forward.1} parent=0 // pred_fallthru
    _
  // Predicated region
  $region150: #{sac_forward.1} parent=0 // pred_check
    _
  $region151: #{sac_forward.1} parent=0 // pred_check_branch
    %812 = sbr.rel (0) target = $region153
  $region152: #{sac_forward.1} parent=0 // pred_region
    _
  $region153: #{sac_forward.1} parent=0 // pred_fallthru
    _
  // Predicated region
  $region154: #{sac_forward.1} parent=0 // pred_check
    _
  $region155: #{sac_forward.1} parent=0 // pred_check_branch
    %814 = sbr.rel (0) target = $region157
  $region156: #{sac_forward.1} parent=0 // pred_region
    _
  $region157: #{sac_forward.1} parent=0 // pred_fallthru
    _
  // Predicated region
  $region158: #{sac_forward.1} parent=0 // pred_check
    _
  $region159: #{sac_forward.1} parent=0 // pred_check_branch
    %816 = sbr.rel (0) target = $region161
  $region160: #{sac_forward.1} parent=0 // pred_region
    _
  $region161: #{sac_forward.1} parent=0 // pred_fallthru
    _
  // Predicated region
  $region162: #{sac_forward.1} parent=0 // pred_check
    _
  $region163: #{sac_forward.1} parent=0 // pred_check_branch
    %818 = sbr.rel (0) target = $region165
  $region164: #{sac_forward.1} parent=0 // pred_region
    _
  $region165: #{sac_forward.1} parent=0 // pred_fallthru
    _
  // Predicated region
  $region166: #{sac_forward.1} parent=0 // pred_check
    _
  $region167: #{sac_forward.1} parent=0 // pred_check_branch
    %820 = sbr.rel (0) target = $region169
  $region168: #{sac_forward.1} parent=0 // pred_region
    _
  $region169: #{sac_forward.1} parent=0 // pred_fallthru
    _
  // Predicated region
  $region170: #{sac_forward.1} parent=0 // pred_check
    _
  $region171: #{sac_forward.1} parent=0 // pred_check_branch
    %822 = sbr.rel (0) target = $region173
  $region172: #{sac_forward.1} parent=0 // pred_region
    _
  $region173: #{sac_forward.1} parent=0 // pred_fallthru
    _
  // Predicated region
  $region174: #{sac_forward.1} parent=0 // pred_check
    _
  $region175: #{sac_forward.1} parent=0 // pred_check_branch
    %824 = sbr.rel (0) target = $region177
  $region176: #{sac_forward.1} parent=0 // pred_region
    _
  $region177: #{sac_forward.1} parent=0 // pred_fallthru
    _
  // Predicated region
  $region178: #{sac_forward.1} parent=0 // pred_check
    _
  $region179: #{sac_forward.1} parent=0 // pred_check_branch
    %826 = sbr.rel (0) target = $region181
  $region180: #{sac_forward.1} parent=0 // pred_region
    _
  $region181: #{sac_forward.1} parent=0 // pred_fallthru
    _

</llo_original>
